<compile_context>
chip_gen: v7x
topology: tpu7x:2x2x1
jax: 0.10.0
libtpu: 0.0.40
codegen_flags: <defaults>
</compile_context>

<pallas_src>
import functools

import jax
import jax.numpy as jnp
from jax.experimental import pallas as pl
from jax.experimental.pallas import tpu as pltpu

NEG_SLOPE = 0.1                      # GATLayer default leaky-relu negative slope
XAVIER_GAIN = jnp.sqrt(2.0)          # nn.init.calculate_gain('relu')
MASK_BIAS = -1e30


# ---------------------------------------------------------------------------
# Fused Pallas kernel: grid = (batch, layer).  One GAT layer per step; the
# activation is carried in VMEM scratch and the out_mlp sum accumulates into
# the (layer-resident) output block.
# ---------------------------------------------------------------------------
def _gat_encoder_kernel(x_ref, wb_ref, fcw_ref, fcb_ref, al_ref, ar_ref,
                        ofw_ref, ofb_ref, mlpw_ref, mlpb_ref, prelu_ref,
                        out_ref, x_carry):
    l = pl.program_id(1)
    H, _, Dh = al_ref.shape                 # heads, 1, head_dim

    @pl.when(l == 0)
    def _():
        x_carry[...] = x_ref[...]
        out_ref[...] = jnp.zeros_like(out_ref)

    w = wb_ref[0]                           # (N, N) edge weights, w[dst, src]
    bias = wb_ref[1]                        # (N, N) 0 on edges, -1e30 off-edge
    x = x_carry[...]                        # (N, D) f32 activation from layer l-1

    # fc: one full-width bf16 matmul; output columns are already head-major.
    feat = jnp.dot(x.astype(jnp.bfloat16), fcw_ref[...],
                   preferred_element_type=jnp.float32) + fcb_ref[...]   # (N, D)

    # head split: H static lane slices -> (H, N, Dh); bf16 copy for the MXU.
    feat_h = jnp.stack([feat[:, h * Dh:(h + 1) * Dh] for h in range(H)], axis=0)
    feat_hb = feat_h.astype(jnp.bfloat16)

    # attention terms: er (destination, column) on the VPU (natural (H,N,1)
    # layout); el (source, row) via a tiny batched dot so it lands directly in
    # the lane-major (H,1,N) layout needed for the broadcasted sum.
    er_col = jnp.sum(feat_h * ar_ref[...], axis=-1, keepdims=True)       # (H,N,1)
    el_row = jax.lax.dot_general(
        al_ref[...], feat_h, (((2,), (2,)), ((0,), (0,))),
        preferred_element_type=jnp.float32)                              # (H,1,N)

    # logits e[h, dst, src] = leaky_relu(el[src] + er[dst]) * w + mask bias
    e = er_col + el_row                                                  # (H,N,N)
    e = jnp.maximum(e, NEG_SLOPE * e)        # leaky relu, slope in (0,1)
    e = e * w[None] + bias[None]

    # masked edge softmax over incoming edges (src axis).  Off-edge entries sit
    # at -1e30 and underflow to exactly 0 after exp (a node with no incoming
    # edge degrades to uniform attention instead of NaN).
    e_max = jnp.max(e, axis=-1, keepdims=True)
    p = jnp.exp(e - e_max)
    denom = jnp.sum(p, axis=-1, keepdims=True)
    a = (p * pl.reciprocal(denom, approx=True)).astype(jnp.bfloat16)     # (H,N,N)

    # message aggregation, head-batched, bf16 operands / f32 accumulation.
    msg = jax.lax.dot_general(
        a, feat_hb, (((2,), (1,)), ((0,), (0,))),
        preferred_element_type=jnp.float32)                              # (H,N,Dh)

    # out_fc + head concat in one shot: ofw_ref[h] is (Dh, H*Od) with out_fc_w
    # in columns h*Od:(h+1)*Od and zeros elsewhere; summing the batched matmul
    # over heads yields the head-major concatenated output with no transpose.
    o = jnp.sum(jax.lax.dot_general(
        msg.astype(jnp.bfloat16), ofw_ref[...],
        (((2,), (1,)), ((0,), (0,))),
        preferred_element_type=jnp.float32), axis=0) + ofb_ref[...]      # (N, H*Od)

    # PReLU (single shared learned parameter) -- keep the select, alpha may
    # leave [0, 1] after training so the max rewrite would be wrong here.
    alpha = prelu_ref[...]                                               # (1, 1)
    o = jnp.where(o > 0, o, alpha * o)

    # fold this layer's slice of out_mlp into the resident output block
    # (replaces the layer concat entirely).
    out_ref[...] += jnp.dot(o.astype(jnp.bfloat16), mlpw_ref[...],
                            preferred_element_type=jnp.float32)

    x_carry[...] = o                                                     # next layer input

    @pl.when(l == pl.num_programs(1) - 1)
    def _():
        out_ref[...] += mlpb_ref[...]


# ---------------------------------------------------------------------------
# Host-side parameter / graph preparation (layout plumbing + bf16 casts).
# Call these ONCE, outside the jitted forward path.
# ---------------------------------------------------------------------------
def prep_params(params, num_heads):
    layers = params['layers']
    L = len(layers)
    H = num_heads
    D = layers[0]['fc_w'].shape[0]
    Dh = D // H
    Od = layers[0]['out_fc_w'].shape[1]
    out_dim = params['out_mlp_w'].shape[1]
    eye_h = jnp.eye(H, dtype=jnp.float32)

    fcw = jnp.stack([p['fc_w'] for p in layers]).astype(jnp.bfloat16)       # (L,D,D)
    fcb = jnp.stack([p['fc_b'] for p in layers])                            # (L,1,D)
    al = jnp.stack([p['attn_left'][:, None, :] for p in layers])            # (L,H,1,Dh)
    ar = jnp.stack([p['attn_right'][:, None, :] for p in layers])           # (L,H,1,Dh)
    # ofw[l, h, :, h*Od:(h+1)*Od] = out_fc_w, zeros elsewhere.
    ofw = jnp.stack([
        jnp.einsum('kq,hg->hkgq', p['out_fc_w'], eye_h).reshape(H, Dh, H * Od)
        for p in layers]).astype(jnp.bfloat16)                              # (L,H,Dh,H*Od)
    ofb = jnp.stack([jnp.tile(p['out_fc_b'], (1, H)) for p in layers])      # (L,1,H*Od)
    mlpw = params['out_mlp_w'].reshape(L, H * Od, out_dim).astype(jnp.bfloat16)
    prelu = jnp.stack([p['prelu_a'].reshape(1, 1) for p in layers])         # (L,1,1)
    return dict(fcw=fcw, fcb=fcb, al=al, ar=ar, ofw=ofw, ofb=ofb,
                mlpw=mlpw, mlpb=params['out_mlp_b'], prelu=prelu)


def prep_graph(adj, w):
    """Stack edge weights and additive mask bias into one (2, N, N) input."""
    bias = jnp.where(adj > 0, 0.0, MASK_BIAS).astype(jnp.float32)
    return jnp.stack([w.astype(jnp.float32), bias], axis=0)


# ---------------------------------------------------------------------------
# Forward wrapper
# ---------------------------------------------------------------------------
def gat_encoder_forward(features, wb, pp, *, num_heads):
    B, N, D = features.shape
    H = num_heads
    Dh = D // H
    L = pp['fcw'].shape[0]
    HOd = pp['ofb'].shape[-1]
    out_dim = pp['mlpw'].shape[-1]
    assert D == H * Dh
    assert HOd == D, "chained GAT layers require H * layer_out_dim == in_dim"

    return pl.pallas_call(
        _gat_encoder_kernel,
        out_shape=jax.ShapeDtypeStruct((B, N, out_dim), jnp.float32),
        grid=(B, L),
        in_specs=[
            pl.BlockSpec((None, N, D), lambda b, l: (b, 0, 0)),            # x
            pl.BlockSpec((2, N, N), lambda b, l: (0, 0, 0)),               # w + mask bias
            pl.BlockSpec((None, D, D), lambda b, l: (l, 0, 0)),            # fc_w (bf16)
            pl.BlockSpec((None, 1, D), lambda b, l: (l, 0, 0)),            # fc_b
            pl.BlockSpec((None, H, 1, Dh), lambda b, l: (l, 0, 0, 0)),     # attn_left
            pl.BlockSpec((None, H, 1, Dh), lambda b, l: (l, 0, 0, 0)),     # attn_right
            pl.BlockSpec((None, H, Dh, HOd), lambda b, l: (l, 0, 0, 0)),   # out_fc_w (bf16, padded)
            pl.BlockSpec((None, 1, HOd), lambda b, l: (l, 0, 0)),          # out_fc_b
            pl.BlockSpec((None, HOd, out_dim), lambda b, l: (l, 0, 0)),    # out_mlp_w slice (bf16)
            pl.BlockSpec((1, out_dim), lambda b, l: (0, 0)),               # out_mlp_b
            pl.BlockSpec((None, 1, 1), lambda b, l: (l, 0, 0)),            # prelu alpha
        ],
        out_specs=pl.BlockSpec((None, N, out_dim), lambda b, l: (b, 0, 0)),
        scratch_shapes=[pltpu.VMEM((N, D), jnp.float32)],                  # activation carry
        compiler_params=pltpu.CompilerParams(
            dimension_semantics=("parallel", "arbitrary")),
    )(features, wb, pp['fcw'], pp['fcb'], pp['al'], pp['ar'],
      pp['ofw'], pp['ofb'], pp['mlpw'], pp['mlpb'], pp['prelu'])


# ---------------------------------------------------------------------------
# Pure-JAX f32 reference (for a sanity check)
# ---------------------------------------------------------------------------
def _gat_layer_ref(x, adj, w, p, num_heads):
    B, N, D = x.shape
    Dh = D // num_heads
    feat = jnp.einsum('bnd,de->bne', x, p['fc_w']) + p['fc_b']
    feat_h = feat.reshape(B, N, num_heads, Dh)
    el = jnp.sum(feat_h * p['attn_left'][None, None], axis=-1)    # (B,N,H) src
    er = jnp.sum(feat_h * p['attn_right'][None, None], axis=-1)   # (B,N,H) dst
    e = er[:, :, None, :] + el[:, None, :, :]                     # (B,Nd,Ns,H)
    e = jnp.where(e > 0, e, NEG_SLOPE * e)
    e = e * w[None, :, :, None]
    e = jnp.where(adj[None, :, :, None] > 0, e, MASK_BIAS)
    e_max = jnp.max(e, axis=2, keepdims=True)
    pexp = jnp.exp(e - e_max) * adj[None, :, :, None]
    a = pexp / jnp.sum(pexp, axis=2, keepdims=True)
    rst = jnp.einsum('bdsh,bshk->bdhk', a, feat_h)
    o = jnp.einsum('bdhk,ko->bdho', rst, p['out_fc_w']) + p['out_fc_b']
    alpha = p['prelu_a'][0]
    o = jnp.where(o > 0, o, alpha * o)
    return o.reshape(B, N, -1)


def gat_encoder_ref(features, adj, w, params, num_heads):
    x = features
    outs = []
    for p in params['layers']:
        x = _gat_layer_ref(x, adj, w, p, num_heads)
        outs.append(x)
    h = jnp.concatenate(outs, axis=-1)
    return jnp.einsum('bnd,do->bno', h, params['out_mlp_w']) + params['out_mlp_b']


# ---------------------------------------------------------------------------
# Deterministic parameter init
# ---------------------------------------------------------------------------
def _xavier(key, shape):
    fan_in, fan_out = shape[0], shape[-1]
    limit = XAVIER_GAIN * jnp.sqrt(6.0 / (fan_in + fan_out))
    return jax.random.uniform(key, shape, jnp.float32, -limit, limit)


def init_params(key, in_dim, out_dim, num_layers, num_heads):
    Dh = in_dim // num_heads
    layer_out = out_dim // num_heads   # GATLayer gets out_dim // num_heads
    layers = []
    for _ in range(num_layers):
        key, k0, k1, k2, k3, k4, k5 = jax.random.split(key, 7)
        layers.append(dict(
            fc_w=_xavier(k0, (in_dim, in_dim)),
            fc_b=jax.random.uniform(k1, (1, in_dim), jnp.float32, -0.1, 0.1),
            attn_left=_xavier(k2, (num_heads, Dh)),
            attn_right=_xavier(k3, (num_heads, Dh)),
            out_fc_w=_xavier(k4, (Dh, layer_out)),
            out_fc_b=jax.random.uniform(k5, (1, layer_out), jnp.float32, -0.1, 0.1),
            prelu_a=jnp.array([0.25], jnp.float32),   # nn.PReLU default
        ))
    key, k1, k2 = jax.random.split(key, 3)
    return dict(
        layers=layers,
        out_mlp_w=_xavier(k1, (num_layers * out_dim, out_dim)),
        out_mlp_b=jax.random.uniform(k2, (1, out_dim), jnp.float32, -0.1, 0.1),
    )


# ---------------------------------------------------------------------------
if __name__ == "__main__":
    B, N = 2, 16
    in_dim = out_dim = 32      # layers are chained, so in_dim must equal out_dim
    num_heads, num_layers = 4, 2

    key = jax.random.PRNGKey(0)
    k_feat, k_adj, k_w, k_par = jax.random.split(key, 4)

    features = jax.random.normal(k_feat, (B, N, in_dim), jnp.float32)
    # Dense synthetic graph: random edges + self loops (so every node has an
    # incoming edge and the edge-softmax denominator is never empty).
    adj = (jax.random.uniform(k_adj, (N, N)) < 0.35).astype(jnp.float32)
    adj = jnp.maximum(adj, jnp.eye(N, dtype=jnp.float32))
    w = jax.random.uniform(k_w, (N, N), jnp.float32, 0.5, 1.5) * adj

    params = init_params(k_par, in_dim, out_dim, num_layers, num_heads)

    # Layout prep, bf16 casts and mask construction hoisted out of the jitted
    # forward path (run once, not per call).
    pp = prep_params(params, num_heads)
    wb = prep_graph(adj, w)

    fwd = jax.jit(functools.partial(gat_encoder_forward, num_heads=num_heads))
    out = jax.block_until_ready(fwd(features, wb, pp))

    ref = gat_encoder_ref(features, adj, w, params, num_heads)
    assert out.shape == (B, N, out_dim), out.shape
    # The kernel feeds the MXU bf16 operands (f32 accumulation) while the
    # reference is pure f32, so compare with a scale-aware tolerance: max abs
    # error must stay below 10% of the output dynamic range (structural bugs
    # produce O(1) relative errors and still fail this check; NaNs fail too).
    err = float(jnp.max(jnp.abs(out - ref)))
    scale = float(jnp.max(jnp.abs(ref)))
    assert err <= 0.1 * scale + 1e-3, (err, scale)
    print("KERNEL_OK")
</pallas_src>

<mosaic_0001>
module attributes {stable_mosaic.version = 11 : i64} {
  func.func @_gat_encoder_kernel(%arg0: i32, %arg1: i32, %arg2: memref<1x16x32xf32, #tpu.memory_space<vmem>>, %arg3: memref<2x16x16xf32, #tpu.memory_space<vmem>>, %arg4: memref<1x32x32xbf16, #tpu.memory_space<vmem>>, %arg5: memref<1x1x32xf32, #tpu.memory_space<vmem>>, %arg6: memref<1x4x1x8xf32, #tpu.memory_space<vmem>>, %arg7: memref<1x4x1x8xf32, #tpu.memory_space<vmem>>, %arg8: memref<1x4x8x32xbf16, #tpu.memory_space<vmem>>, %arg9: memref<1x1x32xf32, #tpu.memory_space<vmem>>, %arg10: memref<1x32x32xbf16, #tpu.memory_space<vmem>>, %arg11: memref<1x32xf32, #tpu.memory_space<vmem>>, %arg12: memref<1x1x1xf32, #tpu.memory_space<vmem>>, %arg13: memref<1x16x32xf32, #tpu.memory_space<vmem>>, %arg14: memref<16x32xf32, #tpu.memory_space<vmem>>) attributes {dimension_semantics = [#tpu.dimension_semantics<parallel>, #tpu.dimension_semantics<arbitrary>], iteration_bounds = array<i64: 2, 2>, scalar_prefetch = 0 : i64, scratch_operands = 1 : i64, tpu.core_type = #tpu.core_type<tc>, window_params = [{transform_indices = @transform_0, window_bounds = array<i64: 1, 16, 32>}, {pipeline_mode = #tpu.pipeline_mode<synchronous>, transform_indices = @transform_1, window_bounds = array<i64: 2, 16, 16>}, {transform_indices = @transform_2, window_bounds = array<i64: 1, 32, 32>}, {transform_indices = @transform_3, window_bounds = array<i64: 1, 1, 32>}, {transform_indices = @transform_4, window_bounds = array<i64: 1, 4, 1, 8>}, {transform_indices = @transform_5, window_bounds = array<i64: 1, 4, 1, 8>}, {transform_indices = @transform_6, window_bounds = array<i64: 1, 4, 8, 32>}, {transform_indices = @transform_7, window_bounds = array<i64: 1, 1, 32>}, {transform_indices = @transform_8, window_bounds = array<i64: 1, 32, 32>}, {pipeline_mode = #tpu.pipeline_mode<synchronous>, transform_indices = @transform_9, window_bounds = array<i64: 1, 32>}, {transform_indices = @transform_10, window_bounds = array<i64: 1, 1, 1>}, {transform_indices = @transform_11, window_bounds = array<i64: 1, 16, 32>}]} {
    %c0_i32 = arith.constant 0 : i32
    %0 = arith.cmpi eq, %arg1, %c0_i32 : i32
    %1 = arith.extui %0 : i1 to i32
    %c0_i32_0 = arith.constant 0 : i32
    %2 = arith.cmpi ne, %1, %c0_i32_0 : i32
    scf.if %2 {
      %c0_53 = arith.constant 0 : index
      %c0_54 = arith.constant 0 : index
      %c0_55 = arith.constant 0 : index
      %89 = vector.load %arg2[%c0_53, %c0_54, %c0_55] : memref<1x16x32xf32, #tpu.memory_space<vmem>>, vector<1x16x32xf32>
      %90 = vector.shape_cast %89 : vector<1x16x32xf32> to vector<16x32xf32>
      %c0_56 = arith.constant 0 : index
      %c0_57 = arith.constant 0 : index
      %91 = vector.load %arg14[%c0_56, %c0_57] : memref<16x32xf32, #tpu.memory_space<vmem>>, vector<16x32xf32>
      tpu.vector_store %arg14[%c0_56, %c0_57], %90 {strides = array<i32>} : memref<16x32xf32, #tpu.memory_space<vmem>>, vector<16x32xf32>,
      %cst_58 = arith.constant 0.000000e+00 : f32
      %92 = vector.broadcast %cst_58 : f32 to vector<16x32xf32>
      %c0_59 = arith.constant 0 : index
      %c0_60 = arith.constant 0 : index
      %c0_61 = arith.constant 0 : index
      %93 = vector.load %arg13[%c0_59, %c0_60, %c0_61] : memref<1x16x32xf32, #tpu.memory_space<vmem>>, vector<1x16x32xf32>
      %94 = vector.shape_cast %93 : vector<1x16x32xf32> to vector<16x32xf32>
      %95 = vector.shape_cast %92 : vector<16x32xf32> to vector<1x16x32xf32>
      tpu.vector_store %arg13[%c0_59, %c0_60, %c0_61], %95 {strides = array<i32>} : memref<1x16x32xf32, #tpu.memory_space<vmem>>, vector<1x16x32xf32>,
    } else {
    }
    %c0 = arith.constant 0 : index
    %c0_1 = arith.constant 0 : index
    %c0_2 = arith.constant 0 : index
    %3 = vector.load %arg3[%c0, %c0_1, %c0_2] : memref<2x16x16xf32, #tpu.memory_space<vmem>>, vector<1x16x16xf32>
    %4 = vector.shape_cast %3 : vector<1x16x16xf32> to vector<16x16xf32>
    %c1 = arith.constant 1 : index
    %c0_3 = arith.constant 0 : index
    %c0_4 = arith.constant 0 : index
    %5 = vector.load %arg3[%c1, %c0_3, %c0_4] : memref<2x16x16xf32, #tpu.memory_space<vmem>>, vector<1x16x16xf32>
    %6 = vector.shape_cast %5 : vector<1x16x16xf32> to vector<16x16xf32>
    %c0_5 = arith.constant 0 : index
    %c0_6 = arith.constant 0 : index
    %7 = vector.load %arg14[%c0_5, %c0_6] : memref<16x32xf32, #tpu.memory_space<vmem>>, vector<16x32xf32>
    %8 = arith.truncf %7 : vector<16x32xf32> to vector<16x32xbf16>
    %c0_7 = arith.constant 0 : index
    %c0_8 = arith.constant 0 : index
    %c0_9 = arith.constant 0 : index
    %9 = vector.load %arg4[%c0_7, %c0_8, %c0_9] : memref<1x32x32xbf16, #tpu.memory_space<vmem>>, vector<1x32x32xbf16>
    %10 = vector.shape_cast %9 : vector<1x32x32xbf16> to vector<32x32xbf16>
    %cst = arith.constant dense<0.000000e+00> : vector<16x32xf32>
    %11 = tpu.matmul %8, %10, %cst {dimension_numbers = #tpu.dot_dimension_numbers<[1], [0], [0], [1], [0, 0, 1, 1], [], []>} : vector<16x32xbf16>, vector<32x32xbf16>, vector<16x32xf32> -> vector<16x32xf32>
    %c0_10 = arith.constant 0 : index
    %c0_11 = arith.constant 0 : index
    %c0_12 = arith.constant 0 : index
    %12 = vector.load %arg5[%c0_10, %c0_11, %c0_12] : memref<1x1x32xf32, #tpu.memory_space<vmem>>, vector<1x1x32xf32>
    %13 = vector.shape_cast %12 : vector<1x1x32xf32> to vector<1x32xf32>
    %14 = vector.broadcast %13 : vector<1x32xf32> to vector<16x32xf32>
    %15 = arith.addf %11, %14 : vector<16x32xf32>
    %16 = vector.extract_strided_slice %15 {offsets = [0, 0], sizes = [16, 8], strides = [1, 1]} : vector<16x32xf32> to vector<16x8xf32>
    %17 = vector.extract_strided_slice %15 {offsets = [0, 8], sizes = [16, 8], strides = [1, 1]} : vector<16x32xf32> to vector<16x8xf32>
    %18 = vector.extract_strided_slice %15 {offsets = [0, 16], sizes = [16, 8], strides = [1, 1]} : vector<16x32xf32> to vector<16x8xf32>
    %19 = vector.extract_strided_slice %15 {offsets = [0, 24], sizes = [16, 8], strides = [1, 1]} : vector<16x32xf32> to vector<16x8xf32>
    %20 = vector.shape_cast %16 : vector<16x8xf32> to vector<1x16x8xf32>
    %21 = vector.shape_cast %17 : vector<16x8xf32> to vector<1x16x8xf32>
    %22 = vector.shape_cast %18 : vector<16x8xf32> to vector<1x16x8xf32>
    %23 = vector.shape_cast %19 : vector<16x8xf32> to vector<1x16x8xf32>
    %24 = tpu.concatenate %20, %21, %22, %23 in 0 : vector<1x16x8xf32>, vector<1x16x8xf32>, vector<1x16x8xf32>, vector<1x16x8xf32> -> vector<4x16x8xf32>
    %25 = arith.truncf %24 : vector<4x16x8xf32> to vector<4x16x8xbf16>
    %c0_13 = arith.constant 0 : index
    %c0_14 = arith.constant 0 : index
    %c0_15 = arith.constant 0 : index
    %c0_16 = arith.constant 0 : index
    %26 = vector.load %arg7[%c0_13, %c0_14, %c0_15, %c0_16] : memref<1x4x1x8xf32, #tpu.memory_space<vmem>>, vector<1x4x1x8xf32>
    %27 = vector.shape_cast %26 : vector<1x4x1x8xf32> to vector<4x1x8xf32>
    %28 = vector.broadcast %27 : vector<4x1x8xf32> to vector<4x16x8xf32>
    %29 = arith.mulf %24, %28 : vector<4x16x8xf32>
    %cst_17 = arith.constant dense<0.000000e+00> : vector<4x16xf32>
    %30 = vector.multi_reduction <add>, %29, %cst_17 [2] : vector<4x16x8xf32> to vector<4x16xf32>
    %31 = vector.shape_cast %30 : vector<4x16xf32> to vector<4x16x1xf32>
    %c0_18 = arith.constant 0 : index
    %c0_19 = arith.constant 0 : index
    %c0_20 = arith.constant 0 : index
    %c0_21 = arith.constant 0 : index
    %32 = vector.load %arg6[%c0_18, %c0_19, %c0_20, %c0_21] : memref<1x4x1x8xf32, #tpu.memory_space<vmem>>, vector<1x4x1x8xf32>
    %33 = vector.shape_cast %32 : vector<1x4x1x8xf32> to vector<4x1x8xf32>
    %cst_22 = arith.constant dense<0.000000e+00> : vector<4x1x16xf32>
    %34 = tpu.matmul %33, %24, %cst_22 {dimension_numbers = #tpu.dot_dimension_numbers<[2], [2], [1], [1], [0, 0, 0, 1, 1, 1], [0], [0]>} : vector<4x1x8xf32>, vector<4x16x8xf32>, vector<4x1x16xf32> -> vector<4x1x16xf32>
    %35 = vector.broadcast %31 : vector<4x16x1xf32> to vector<4x16x16xf32>
    %36 = vector.broadcast %34 : vector<4x1x16xf32> to vector<4x16x16xf32>
    %37 = arith.addf %35, %36 : vector<4x16x16xf32>
    %cst_23 = arith.constant 1.000000e-01 : f32
    %38 = vector.broadcast %cst_23 : f32 to vector<4x16x16xf32>
    %39 = arith.mulf %38, %37 : vector<4x16x16xf32>
    %40 = arith.maximumf %37, %39 : vector<4x16x16xf32>
    %41 = vector.shape_cast %4 : vector<16x16xf32> to vector<1x16x16xf32>
    %42 = vector.broadcast %41 : vector<1x16x16xf32> to vector<4x16x16xf32>
    %43 = arith.mulf %40, %42 : vector<4x16x16xf32>
    %44 = vector.shape_cast %6 : vector<16x16xf32> to vector<1x16x16xf32>
    %45 = vector.broadcast %44 : vector<1x16x16xf32> to vector<4x16x16xf32>
    %46 = arith.addf %43, %45 : vector<4x16x16xf32>
    %cst_24 = arith.constant dense<0xFF800000> : vector<4x16xf32>
    %47 = vector.multi_reduction <maximumf>, %46, %cst_24 [2] : vector<4x16x16xf32> to vector<4x16xf32>
    %48 = vector.shape_cast %47 : vector<4x16xf32> to vector<4x16x1xf32>
    %49 = vector.broadcast %48 : vector<4x16x1xf32> to vector<4x16x16xf32>
    %50 = arith.subf %46, %49 : vector<4x16x16xf32>
    %51 = math.exp %50 : vector<4x16x16xf32>
    %cst_25 = arith.constant dense<0.000000e+00> : vector<4x16xf32>
    %52 = vector.multi_reduction <add>, %51, %cst_25 [2] : vector<4x16x16xf32> to vector<4x16xf32>
    %53 = vector.shape_cast %52 : vector<4x16xf32> to vector<4x16x1xf32>
    %54 = tpu.reciprocal %53 {approx = true} : vector<4x16x1xf32> -> vector<4x16x1xf32>
    %55 = vector.broadcast %54 : vector<4x16x1xf32> to vector<4x16x16xf32>
    %56 = arith.mulf %51, %55 : vector<4x16x16xf32>
    %57 = arith.truncf %56 : vector<4x16x16xf32> to vector<4x16x16xbf16>
    %cst_26 = arith.constant dense<0.000000e+00> : vector<4x16x8xf32>
    %58 = tpu.matmul %57, %25, %cst_26 {dimension_numbers = #tpu.dot_dimension_numbers<[2], [1], [1], [2], [0, 0, 0, 1, 1, 2], [0], [0]>} : vector<4x16x16xbf16>, vector<4x16x8xbf16>, vector<4x16x8xf32> -> vector<4x16x8xf32>
    %59 = arith.truncf %58 : vector<4x16x8xf32> to vector<4x16x8xbf16>
    %c0_27 = arith.constant 0 : index
    %c0_28 = arith.constant 0 : index
    %c0_29 = arith.constant 0 : index
    %c0_30 = arith.constant 0 : index
    %60 = vector.load %arg8[%c0_27, %c0_28, %c0_29, %c0_30] : memref<1x4x8x32xbf16, #tpu.memory_space<vmem>>, vector<1x4x8x32xbf16>
    %61 = vector.shape_cast %60 : vector<1x4x8x32xbf16> to vector<4x8x32xbf16>
    %cst_31 = arith.constant dense<0.000000e+00> : vector<4x16x32xf32>
    %62 = tpu.matmul %59, %61, %cst_31 {dimension_numbers = #tpu.dot_dimension_numbers<[2], [1], [1], [2], [0, 0, 0, 1, 1, 2], [0], [0]>} : vector<4x16x8xbf16>, vector<4x8x32xbf16>, vector<4x16x32xf32> -> vector<4x16x32xf32>
    %cst_32 = arith.constant dense<0.000000e+00> : vector<16x32xf32>
    %63 = vector.multi_reduction <add>, %62, %cst_32 [0] : vector<4x16x32xf32> to vector<16x32xf32>
    %c0_33 = arith.constant 0 : index
    %c0_34 = arith.constant 0 : index
    %c0_35 = arith.constant 0 : index
    %64 = vector.load %arg9[%c0_33, %c0_34, %c0_35] : memref<1x1x32xf32, #tpu.memory_space<vmem>>, vector<1x1x32xf32>
    %65 = vector.shape_cast %64 : vector<1x1x32xf32> to vector<1x32xf32>
    %66 = vector.broadcast %65 : vector<1x32xf32> to vector<16x32xf32>
    %67 = arith.addf %63, %66 : vector<16x32xf32>
    %c0_36 = arith.constant 0 : index
    %c0_37 = arith.constant 0 : index
    %c0_38 = arith.constant 0 : index
    %68 = vector.load %arg12[%c0_36, %c0_37, %c0_38] : memref<1x1x1xf32, #tpu.memory_space<vmem>>, vector<1x1x1xf32>
    %69 = vector.shape_cast %68 : vector<1x1x1xf32> to vector<1x1xf32>
    %cst_39 = arith.constant 0.000000e+00 : f32
    %70 = vector.broadcast %cst_39 : f32 to vector<16x32xf32>
    %71 = arith.cmpf ogt, %67, %70 : vector<16x32xf32>
    %72 = vector.broadcast %69 : vector<1x1xf32> to vector<16x32xf32>
    %73 = arith.mulf %72, %67 : vector<16x32xf32>
    %74 = arith.select %71, %67, %73 : vector<16x32xi1>, vector<16x32xf32>
    %c0_40 = arith.constant 0 : index
    %c0_41 = arith.constant 0 : index
    %c0_42 = arith.constant 0 : index
    %75 = vector.load %arg13[%c0_40, %c0_41, %c0_42] : memref<1x16x32xf32, #tpu.memory_space<vmem>>, vector<1x16x32xf32>
    %76 = vector.shape_cast %75 : vector<1x16x32xf32> to vector<16x32xf32>
    %77 = arith.truncf %74 : vector<16x32xf32> to vector<16x32xbf16>
    %c0_43 = arith.constant 0 : index
    %c0_44 = arith.constant 0 : index
    %c0_45 = arith.constant 0 : index
    %78 = vector.load %arg10[%c0_43, %c0_44, %c0_45] : memref<1x32x32xbf16, #tpu.memory_space<vmem>>, vector<1x32x32xbf16>
    %79 = vector.shape_cast %78 : vector<1x32x32xbf16> to vector<32x32xbf16>
    %cst_46 = arith.constant dense<0.000000e+00> : vector<16x32xf32>
    %80 = tpu.matmul %77, %79, %cst_46 {dimension_numbers = #tpu.dot_dimension_numbers<[1], [0], [0], [1], [0, 0, 1, 1], [], []>} : vector<16x32xbf16>, vector<32x32xbf16>, vector<16x32xf32> -> vector<16x32xf32>
    %81 = arith.addf %76, %80 : vector<16x32xf32>
    %c0_47 = arith.constant 0 : index
    %c0_48 = arith.constant 0 : index
    %c0_49 = arith.constant 0 : index
    %82 = vector.load %arg13[%c0_47, %c0_48, %c0_49] : memref<1x16x32xf32, #tpu.memory_space<vmem>>, vector<1x16x32xf32>
    %83 = vector.shape_cast %82 : vector<1x16x32xf32> to vector<16x32xf32>
    %84 = vector.shape_cast %81 : vector<16x32xf32> to vector<1x16x32xf32>
    tpu.vector_store %arg13[%c0_47, %c0_48, %c0_49], %84 {strides = array<i32>} : memref<1x16x32xf32, #tpu.memory_space<vmem>>, vector<1x16x32xf32>,
    %c0_50 = arith.constant 0 : index
    %c0_51 = arith.constant 0 : index
    %85 = vector.load %arg14[%c0_50, %c0_51] : memref<16x32xf32, #tpu.memory_space<vmem>>, vector<16x32xf32>
    tpu.vector_store %arg14[%c0_50, %c0_51], %74 {strides = array<i32>} : memref<16x32xf32, #tpu.memory_space<vmem>>, vector<16x32xf32>,
    %c1_i32 = arith.constant 1 : i32
    %86 = arith.cmpi eq, %arg1, %c1_i32 : i32
    %87 = arith.extui %86 : i1 to i32
    %c0_i32_52 = arith.constant 0 : i32
    %88 = arith.cmpi ne, %87, %c0_i32_52 : i32
    scf.if %88 {
      %c0_53 = arith.constant 0 : index
      %c0_54 = arith.constant 0 : index
      %c0_55 = arith.constant 0 : index
      %89 = vector.load %arg13[%c0_53, %c0_54, %c0_55] : memref<1x16x32xf32, #tpu.memory_space<vmem>>, vector<1x16x32xf32>
      %90 = vector.shape_cast %89 : vector<1x16x32xf32> to vector<16x32xf32>
      %c0_56 = arith.constant 0 : index
      %c0_57 = arith.constant 0 : index
      %91 = vector.load %arg11[%c0_56, %c0_57] : memref<1x32xf32, #tpu.memory_space<vmem>>, vector<1x32xf32>
      %92 = vector.broadcast %91 : vector<1x32xf32> to vector<16x32xf32>
      %93 = arith.addf %90, %92 : vector<16x32xf32>
      %c0_58 = arith.constant 0 : index
      %c0_59 = arith.constant 0 : index
      %c0_60 = arith.constant 0 : index
      %94 = vector.load %arg13[%c0_58, %c0_59, %c0_60] : memref<1x16x32xf32, #tpu.memory_space<vmem>>, vector<1x16x32xf32>
      %95 = vector.shape_cast %94 : vector<1x16x32xf32> to vector<16x32xf32>
      %96 = vector.shape_cast %93 : vector<16x32xf32> to vector<1x16x32xf32>
      tpu.vector_store %arg13[%c0_58, %c0_59, %c0_60], %96 {strides = array<i32>} : memref<1x16x32xf32, #tpu.memory_space<vmem>>, vector<1x16x32xf32>,
    } else {
    }
    return
  }
  func.func @transform_0(%arg0: i32, %arg1: i32) -> (i32, i32, i32) {
    %c0_i32 = arith.constant 0 : i32
    %c0_i32_0 = arith.constant 0 : i32
    %c0_i32_1 = arith.constant 0 : i32
    return %arg0, %c0_i32, %c0_i32_0 : i32, i32, i32
  }
  func.func @transform_1(%arg0: i32, %arg1: i32) -> (i32, i32, i32) {
    %c0_i32 = arith.constant 0 : i32
    %c0_i32_0 = arith.constant 0 : i32
    %c0_i32_1 = arith.constant 0 : i32
    %c0_i32_2 = arith.constant 0 : i32
    return %c0_i32, %c0_i32_0, %c0_i32_1 : i32, i32, i32
  }
  func.func @transform_2(%arg0: i32, %arg1: i32) -> (i32, i32, i32) {
    %c0_i32 = arith.constant 0 : i32
    %c0_i32_0 = arith.constant 0 : i32
    %c0_i32_1 = arith.constant 0 : i32
    return %arg1, %c0_i32, %c0_i32_0 : i32, i32, i32
  }
  func.func @transform_3(%arg0: i32, %arg1: i32) -> (i32, i32, i32) {
    %c0_i32 = arith.constant 0 : i32
    %c0_i32_0 = arith.constant 0 : i32
    %c0_i32_1 = arith.constant 0 : i32
    return %arg1, %c0_i32, %c0_i32_0 : i32, i32, i32
  }
  func.func @transform_4(%arg0: i32, %arg1: i32) -> (i32, i32, i32, i32) {
    %c0_i32 = arith.constant 0 : i32
    %c0_i32_0 = arith.constant 0 : i32
    %c0_i32_1 = arith.constant 0 : i32
    %c0_i32_2 = arith.constant 0 : i32
    return %arg1, %c0_i32, %c0_i32_0, %c0_i32_1 : i32, i32, i32, i32
  }
  func.func @transform_5(%arg0: i32, %arg1: i32) -> (i32, i32, i32, i32) {
    %c0_i32 = arith.constant 0 : i32
    %c0_i32_0 = arith.constant 0 : i32
    %c0_i32_1 = arith.constant 0 : i32
    %c0_i32_2 = arith.constant 0 : i32
    return %arg1, %c0_i32, %c0_i32_0, %c0_i32_1 : i32, i32, i32, i32
  }
  func.func @transform_6(%arg0: i32, %arg1: i32) -> (i32, i32, i32, i32) {
    %c0_i32 = arith.constant 0 : i32
    %c0_i32_0 = arith.constant 0 : i32
    %c0_i32_1 = arith.constant 0 : i32
    %c0_i32_2 = arith.constant 0 : i32
    return %arg1, %c0_i32, %c0_i32_0, %c0_i32_1 : i32, i32, i32, i32
  }
  func.func @transform_7(%arg0: i32, %arg1: i32) -> (i32, i32, i32) {
    %c0_i32 = arith.constant 0 : i32
    %c0_i32_0 = arith.constant 0 : i32
    %c0_i32_1 = arith.constant 0 : i32
    return %arg1, %c0_i32, %c0_i32_0 : i32, i32, i32
  }
  func.func @transform_8(%arg0: i32, %arg1: i32) -> (i32, i32, i32) {
    %c0_i32 = arith.constant 0 : i32
    %c0_i32_0 = arith.constant 0 : i32
    %c0_i32_1 = arith.constant 0 : i32
    return %arg1, %c0_i32, %c0_i32_0 : i32, i32, i32
  }
  func.func @transform_9(%arg0: i32, %arg1: i32) -> (i32, i32) {
    %c0_i32 = arith.constant 0 : i32
    %c0_i32_0 = arith.constant 0 : i32
    %c0_i32_1 = arith.constant 0 : i32
    return %c0_i32, %c0_i32_0 : i32, i32
  }
  func.func @transform_10(%arg0: i32, %arg1: i32) -> (i32, i32, i32) {
    %c0_i32 = arith.constant 0 : i32
    %c0_i32_0 = arith.constant 0 : i32
    %c0_i32_1 = arith.constant 0 : i32
    return %arg1, %c0_i32, %c0_i32_0 : i32, i32, i32
  }
  func.func @transform_11(%arg0: i32, %arg1: i32) -> (i32, i32, i32) {
    %c0_i32 = arith.constant 0 : i32
    %c0_i32_0 = arith.constant 0 : i32
    %c0_i32_1 = arith.constant 0 : i32
    return %arg0, %c0_i32, %c0_i32_0 : i32, i32, i32
  }
}

</mosaic_0001>

<llo_original>
// kernel: gat_encoder_forward.1
$region0: #{gat_encoder_forward.1}
  #allocation0 [shape = 'u32[]', space=smem, size = 0x4, offset = 0x4, fixed_abs, tag = 'smem constant byte address 0x4 - core index']
  #allocation1 [shape = 'u32[144,128]{1,0:T(1,128)}', space=vmem, size = 0x12000, scoped, tag = 'internal scratch']
  #allocation2 [shape = 'f32[16,32]{1,0:T(8,128)}', space=vmem, size = 0x2000, scoped, tag = 'scratch operand']
  %s0 = inlined_call_operand.hbm [shape: f32[2,16,32], index: 0, kind: input, shape index: {}]
  %s1 = inlined_call_operand.hbm [shape: f32[2,16,16], index: 1, kind: input, shape index: {}]
  %s2 = inlined_call_operand.hbm [shape: bf16[2,32,32], index: 2, kind: input, shape index: {}]
  %s3 = inlined_call_operand.vmem [shape: f32[2,1,32], index: 3, kind: input, shape index: {}]
  %s4 = inlined_call_operand.hbm [shape: f32[2,4,1,8], index: 4, kind: input, shape index: {}]
  %s5 = inlined_call_operand.hbm [shape: f32[2,4,1,8], index: 5, kind: input, shape index: {}]
  %s6 = inlined_call_operand.vmem [shape: bf16[2,4,8,32], index: 6, kind: input, shape index: {}]
  %s7 = inlined_call_operand.vmem [shape: f32[2,1,32], index: 7, kind: input, shape index: {}]
  %s8 = inlined_call_operand.hbm [shape: bf16[2,32,32], index: 8, kind: input, shape index: {}]
  %s9 = inlined_call_operand.vmem [shape: f32[1,32], index: 9, kind: input, shape index: {}]
  %s10 = inlined_call_operand.vmem [shape: f32[2,1,1], index: 10, kind: input, shape index: {}]
  %s11 = inlined_call_operand.hbm [shape: f32[2,16,32], index: 11, kind: output, shape index: {}]
  %s12 = sld [smem:[#allocation0]]
  $region109: #{gat_encoder_forward.1} parent=0
    _
  %s14 = ssub.s32 1, %s12
  %s15 = scalar_select 0, %s14, %s12
  $region1: #{gat_encoder_forward.1} parent=0
    #allocation3 [shape = 'u8[16384]{0}', space=vmem, size = 0x4000, scoped, tag = 'input window, operand 0']
    #allocation4 [shape = 's32[2]{0}', space=sflag, size = 0x8, scoped, tag = 'scoped memory for gat_encoder_forward.1']
    #allocation5 [shape = 's32[2]{0}', space=sflag, size = 0x8, scoped, tag = 'scoped memory for gat_encoder_forward.1']
    #allocation6 [shape = 'u8[16384]{0}', space=vmem, size = 0x4000, scoped, tag = 'input window, operand 1, single buffered']
    #allocation7 [shape = 's32[1]{0}', space=sflag, size = 0x4, scoped, tag = 'scoped memory for gat_encoder_forward.1']
    #allocation8 [shape = 'u8[16384]{0}', space=vmem, size = 0x4000, scoped, tag = 'input window, operand 2']
    #allocation9 [shape = 'u8[4096]{0}', space=vmem, size = 0x1000, scoped, tag = 'input window, operand 4']
    #allocation10 [shape = 'u8[4096]{0}', space=vmem, size = 0x1000, scoped, tag = 'input window, operand 5']
    #allocation11 [shape = 'u8[16384]{0}', space=vmem, size = 0x4000, scoped, tag = 'input window, operand 8']
    #allocation12 [shape = 'u8[16384]{0}', space=vmem, size = 0x4000, scoped, tag = 'output window, operand 0']
    %16 = vsyncpa [#allocation4], 0
    %s17 = scalar_lea.sflag [#allocation4], 1
    %18 = vsyncpa %s17, 0
    %19 = vsyncpa [#allocation7], 0
    %20 = vsyncpa [#allocation5], 0
    %s21 = scalar_lea.sflag [#allocation5], 1
    %22 = vsyncpa %s21, 0
    loop: start=0, step=1, limit=6
    $region2: #{gat_encoder_forward.1} parent=1 // loop_pre_header
      _
    $region3: #{gat_encoder_forward.1} parent=1 // loop_header
      %s24 = sphi 0, %s28
      %p25 = scmp.ge.s32.totalorder %s24, 6
      %s31 = sphi 0, %s43
      %s32 = sphi 0, %s39
      %s33 = sphi 0, %s31
      %s34 = sphi 0, %s32
      %s35 = sphi 0, %s33
      %s36 = sphi 0, %s34
      %s46 = sphi 0, %s48
      %s49 = sphi 0, %s46
      %s50 = sphi 0, %s49
      %s66 = sphi 0, %s50
      %s70 = sphi 0, %s70
      %s72 = sphi 0, %s70
      %s73 = sphi 0, %s72
      %s87 = sphi 0, %s73
      %s93 = sphi 0, %s95
      %s96 = sphi 0, %s93
      %s97 = sphi 0, %s96
      %s113 = sphi 0, %s97
      %s119 = sphi 0, %s121
      %s122 = sphi 0, %s119
      %s123 = sphi 0, %s122
      %s139 = sphi 0, %s123
      %s145 = sphi 0, %s147
      %s148 = sphi 0, %s145
      %s149 = sphi 0, %s148
      %s165 = sphi 0, %s149
      %s171 = sphi 0, %s173
      %s174 = sphi 0, %s171
      %s175 = sphi 0, %s174
      %s191 = sphi 0, %s175
      %s197 = sphi 0, %s199
      %s200 = sphi 0, %s197
      %s201 = sphi 0, %s200
      %s217 = sphi 0, %s201
      %s223 = sphi 0, %s225
      %s226 = sphi 0, %s223
      %s227 = sphi 0, %s226
      %s243 = sphi 0, %s227
      %s249 = sphi 0, %s251
      %s252 = sphi 0, %s249
      %s253 = sphi 0, %s252
      %s269 = sphi 0, %s253
      %s273 = sphi 0, %s273
      %s275 = sphi 0, %s273
      %s276 = sphi 0, %s275
      %s290 = sphi 0, %s276
      %s296 = sphi 0, %s298
      %s299 = sphi 0, %s296
      %s300 = sphi 0, %s299
      %s316 = sphi 0, %s300
      %s322 = sphi 0, %s324
      %s325 = sphi 0, %s322
      %s326 = sphi 0, %s325
      %s342 = sphi 0, %s326
    $region4: #{gat_encoder_forward.1} parent=1 // loop_header_branch
      %27 = sbr.rel (%p25) target = $region8
    $region5: #{gat_encoder_forward.1} parent=1 // loop_body
      %s29 = ssub.s32 %s24, 1
      %s30 = ssub.s32 %s24, 2
      %s37 = sadd.s32 1, %s32
      %p38 = scmp.ge.s32.totalorder %s37, 2
      %s39 = scalar_select %p38, 0, %s37
      %s40 = sadd.s32 1, %s31
      %s41 = scalar_select %p38, %s40, %s31
      %p42 = scmp.ge.s32.totalorder %s41, 2
      %s43 = scalar_select %p42, 0, %s41
      %s44 = ssub.s32 %s31, %s43
      %p45 = scmp.eq.s32.totalorder %s44, 0
      %s47 = sadd.s32 %s46, 1
      %s48 = scalar_select %p45, %s46, %s47
      %p51 = pneg %p45
      %p52 = scmp.eq.s32.totalorder %s24, 3
      %p53 = por %p51, %p52
      %p54 = scmp.ne.s32.totalorder %s46, %s49
      %p55 = scmp.eq.s32.totalorder %s24, 0
      %p56 = por %p54, %p55
      %p57 = scmp.ne.s32.totalorder %s46, %s49
      %p58 = scmp.eq.s32.totalorder %s29, 3
      %p59 = por %p57, %p58
      %p60 = scmp.ne.s32.totalorder %s49, %s50
      %p61 = scmp.eq.s32.totalorder %s29, 0
      %p62 = por %p60, %p61
      %p63 = scmp.ne.s32.totalorder %s49, %s50
      %p64 = scmp.eq.s32.totalorder %s30, 3
      %p65 = por %p63, %p64
      %p67 = scmp.ne.s32.totalorder %s50, %s66
      %p68 = scmp.eq.s32.totalorder %s30, 0
      %p69 = por %p67, %p68
      %s71 = sadd.s32 %s70, 1
      %p74 = scmp.eq.s32.totalorder %s24, 3
      %p75 = scmp.ne.s32.totalorder %s70, %s72
      %p76 = scmp.eq.s32.totalorder %s24, 0
      %p77 = por %p75, %p76
      %p78 = scmp.ne.s32.totalorder %s70, %s72
      %p79 = scmp.eq.s32.totalorder %s29, 3
      %p80 = por %p78, %p79
      %p81 = scmp.ne.s32.totalorder %s72, %s73
      %p82 = scmp.eq.s32.totalorder %s29, 0
      %p83 = por %p81, %p82
      %p84 = scmp.ne.s32.totalorder %s72, %s73
      %p85 = scmp.eq.s32.totalorder %s30, 3
      %p86 = por %p84, %p85
      %p88 = scmp.ne.s32.totalorder %s73, %s87
      %p89 = scmp.eq.s32.totalorder %s30, 0
      %p90 = por %p88, %p89
      %s91 = ssub.s32 %s32, %s39
      %p92 = scmp.eq.s32.totalorder %s91, 0
      %s94 = sadd.s32 %s93, 1
      %s95 = scalar_select %p92, %s93, %s94
      %p98 = pneg %p92
      %p99 = scmp.eq.s32.totalorder %s24, 3
      %p100 = por %p98, %p99
      %p101 = scmp.ne.s32.totalorder %s93, %s96
      %p102 = scmp.eq.s32.totalorder %s24, 0
      %p103 = por %p101, %p102
      %p104 = scmp.ne.s32.totalorder %s93, %s96
      %p105 = scmp.eq.s32.totalorder %s29, 3
      %p106 = por %p104, %p105
      %p107 = scmp.ne.s32.totalorder %s96, %s97
      %p108 = scmp.eq.s32.totalorder %s29, 0
      %p109 = por %p107, %p108
      %p110 = scmp.ne.s32.totalorder %s96, %s97
      %p111 = scmp.eq.s32.totalorder %s30, 3
      %p112 = por %p110, %p111
      %p114 = scmp.ne.s32.totalorder %s97, %s113
      %p115 = scmp.eq.s32.totalorder %s30, 0
      %p116 = por %p114, %p115
      %s117 = ssub.s32 %s32, %s39
      %p118 = scmp.eq.s32.totalorder %s117, 0
      %s120 = sadd.s32 %s119, 1
      %s121 = scalar_select %p118, %s119, %s120
      %p124 = pneg %p118
      %p125 = scmp.eq.s32.totalorder %s24, 3
      %p126 = por %p124, %p125
      %p127 = scmp.ne.s32.totalorder %s119, %s122
      %p128 = scmp.eq.s32.totalorder %s24, 0
      %p129 = por %p127, %p128
      %p130 = scmp.ne.s32.totalorder %s119, %s122
      %p131 = scmp.eq.s32.totalorder %s29, 3
      %p132 = por %p130, %p131
      %p133 = scmp.ne.s32.totalorder %s122, %s123
      %p134 = scmp.eq.s32.totalorder %s29, 0
      %p135 = por %p133, %p134
      %p136 = scmp.ne.s32.totalorder %s122, %s123
      %p137 = scmp.eq.s32.totalorder %s30, 3
      %p138 = por %p136, %p137
      %p140 = scmp.ne.s32.totalorder %s123, %s139
      %p141 = scmp.eq.s32.totalorder %s30, 0
      %p142 = por %p140, %p141
      %s143 = ssub.s32 %s32, %s39
      %p144 = scmp.eq.s32.totalorder %s143, 0
      %s146 = sadd.s32 %s145, 1
      %s147 = scalar_select %p144, %s145, %s146
      %p150 = pneg %p144
      %p151 = scmp.eq.s32.totalorder %s24, 3
      %p152 = por %p150, %p151
      %p153 = scmp.ne.s32.totalorder %s145, %s148
      %p154 = scmp.eq.s32.totalorder %s24, 0
      %p155 = por %p153, %p154
      %p156 = scmp.ne.s32.totalorder %s145, %s148
      %p157 = scmp.eq.s32.totalorder %s29, 3
      %p158 = por %p156, %p157
      %p159 = scmp.ne.s32.totalorder %s148, %s149
      %p160 = scmp.eq.s32.totalorder %s29, 0
      %p161 = por %p159, %p160
      %p162 = scmp.ne.s32.totalorder %s148, %s149
      %p163 = scmp.eq.s32.totalorder %s30, 3
      %p164 = por %p162, %p163
      %p166 = scmp.ne.s32.totalorder %s149, %s165
      %p167 = scmp.eq.s32.totalorder %s30, 0
      %p168 = por %p166, %p167
      %s169 = ssub.s32 %s32, %s39
      %p170 = scmp.eq.s32.totalorder %s169, 0
      %s172 = sadd.s32 %s171, 1
      %s173 = scalar_select %p170, %s171, %s172
      %p176 = pneg %p170
      %p177 = scmp.eq.s32.totalorder %s24, 3
      %p178 = por %p176, %p177
      %p179 = scmp.ne.s32.totalorder %s171, %s174
      %p180 = scmp.eq.s32.totalorder %s24, 0
      %p181 = por %p179, %p180
      %p182 = scmp.ne.s32.totalorder %s171, %s174
      %p183 = scmp.eq.s32.totalorder %s29, 3
      %p184 = por %p182, %p183
      %p185 = scmp.ne.s32.totalorder %s174, %s175
      %p186 = scmp.eq.s32.totalorder %s29, 0
      %p187 = por %p185, %p186
      %p188 = scmp.ne.s32.totalorder %s174, %s175
      %p189 = scmp.eq.s32.totalorder %s30, 3
      %p190 = por %p188, %p189
      %p192 = scmp.ne.s32.totalorder %s175, %s191
      %p193 = scmp.eq.s32.totalorder %s30, 0
      %p194 = por %p192, %p193
      %s195 = ssub.s32 %s32, %s39
      %p196 = scmp.eq.s32.totalorder %s195, 0
      %s198 = sadd.s32 %s197, 1
      %s199 = scalar_select %p196, %s197, %s198
      %p202 = pneg %p196
      %p203 = scmp.eq.s32.totalorder %s24, 3
      %p204 = por %p202, %p203
      %p205 = scmp.ne.s32.totalorder %s197, %s200
      %p206 = scmp.eq.s32.totalorder %s24, 0
      %p207 = por %p205, %p206
      %p208 = scmp.ne.s32.totalorder %s197, %s200
      %p209 = scmp.eq.s32.totalorder %s29, 3
      %p210 = por %p208, %p209
      %p211 = scmp.ne.s32.totalorder %s200, %s201
      %p212 = scmp.eq.s32.totalorder %s29, 0
      %p213 = por %p211, %p212
      %p214 = scmp.ne.s32.totalorder %s200, %s201
      %p215 = scmp.eq.s32.totalorder %s30, 3
      %p216 = por %p214, %p215
      %p218 = scmp.ne.s32.totalorder %s201, %s217
      %p219 = scmp.eq.s32.totalorder %s30, 0
      %p220 = por %p218, %p219
      %s221 = ssub.s32 %s32, %s39
      %p222 = scmp.eq.s32.totalorder %s221, 0
      %s224 = sadd.s32 %s223, 1
      %s225 = scalar_select %p222, %s223, %s224
      %p228 = pneg %p222
      %p229 = scmp.eq.s32.totalorder %s24, 3
      %p230 = por %p228, %p229
      %p231 = scmp.ne.s32.totalorder %s223, %s226
      %p232 = scmp.eq.s32.totalorder %s24, 0
      %p233 = por %p231, %p232
      %p234 = scmp.ne.s32.totalorder %s223, %s226
      %p235 = scmp.eq.s32.totalorder %s29, 3
      %p236 = por %p234, %p235
      %p237 = scmp.ne.s32.totalorder %s226, %s227
      %p238 = scmp.eq.s32.totalorder %s29, 0
      %p239 = por %p237, %p238
      %p240 = scmp.ne.s32.totalorder %s226, %s227
      %p241 = scmp.eq.s32.totalorder %s30, 3
      %p242 = por %p240, %p241
      %p244 = scmp.ne.s32.totalorder %s227, %s243
      %p245 = scmp.eq.s32.totalorder %s30, 0
      %p246 = por %p244, %p245
      %s247 = ssub.s32 %s32, %s39
      %p248 = scmp.eq.s32.totalorder %s247, 0
      %s250 = sadd.s32 %s249, 1
      %s251 = scalar_select %p248, %s249, %s250
      %p254 = pneg %p248
      %p255 = scmp.eq.s32.totalorder %s24, 3
      %p256 = por %p254, %p255
      %p257 = scmp.ne.s32.totalorder %s249, %s252
      %p258 = scmp.eq.s32.totalorder %s24, 0
      %p259 = por %p257, %p258
      %p260 = scmp.ne.s32.totalorder %s249, %s252
      %p261 = scmp.eq.s32.totalorder %s29, 3
      %p262 = por %p260, %p261
      %p263 = scmp.ne.s32.totalorder %s252, %s253
      %p264 = scmp.eq.s32.totalorder %s29, 0
      %p265 = por %p263, %p264
      %p266 = scmp.ne.s32.totalorder %s252, %s253
      %p267 = scmp.eq.s32.totalorder %s30, 3
      %p268 = por %p266, %p267
      %p270 = scmp.ne.s32.totalorder %s253, %s269
      %p271 = scmp.eq.s32.totalorder %s30, 0
      %p272 = por %p270, %p271
      %s274 = sadd.s32 %s273, 1
      %p277 = scmp.eq.s32.totalorder %s24, 3
      %p278 = scmp.ne.s32.totalorder %s273, %s275
      %p279 = scmp.eq.s32.totalorder %s24, 0
      %p280 = por %p278, %p279
      %p281 = scmp.ne.s32.totalorder %s273, %s275
      %p282 = scmp.eq.s32.totalorder %s29, 3
      %p283 = por %p281, %p282
      %p284 = scmp.ne.s32.totalorder %s275, %s276
      %p285 = scmp.eq.s32.totalorder %s29, 0
      %p286 = por %p284, %p285
      %p287 = scmp.ne.s32.totalorder %s275, %s276
      %p288 = scmp.eq.s32.totalorder %s30, 3
      %p289 = por %p287, %p288
      %p291 = scmp.ne.s32.totalorder %s276, %s290
      %p292 = scmp.eq.s32.totalorder %s30, 0
      %p293 = por %p291, %p292
      %s294 = ssub.s32 %s32, %s39
      %p295 = scmp.eq.s32.totalorder %s294, 0
      %s297 = sadd.s32 %s296, 1
      %s298 = scalar_select %p295, %s296, %s297
      %p301 = pneg %p295
      %p302 = scmp.eq.s32.totalorder %s24, 3
      %p303 = por %p301, %p302
      %p304 = scmp.ne.s32.totalorder %s296, %s299
      %p305 = scmp.eq.s32.totalorder %s24, 0
      %p306 = por %p304, %p305
      %p307 = scmp.ne.s32.totalorder %s296, %s299
      %p308 = scmp.eq.s32.totalorder %s29, 3
      %p309 = por %p307, %p308
      %p310 = scmp.ne.s32.totalorder %s299, %s300
      %p311 = scmp.eq.s32.totalorder %s29, 0
      %p312 = por %p310, %p311
      %p313 = scmp.ne.s32.totalorder %s299, %s300
      %p314 = scmp.eq.s32.totalorder %s30, 3
      %p315 = por %p313, %p314
      %p317 = scmp.ne.s32.totalorder %s300, %s316
      %p318 = scmp.eq.s32.totalorder %s30, 0
      %p319 = por %p317, %p318
      %s320 = ssub.s32 %s31, %s43
      %p321 = scmp.eq.s32.totalorder %s320, 0
      %s323 = sadd.s32 %s322, 1
      %s324 = scalar_select %p321, %s322, %s323
      %p327 = pneg %p321
      %p328 = scmp.eq.s32.totalorder %s24, 3
      %p329 = por %p327, %p328
      %p330 = scmp.ne.s32.totalorder %s322, %s325
      %p331 = scmp.eq.s32.totalorder %s24, 0
      %p332 = por %p330, %p331
      %p333 = scmp.ne.s32.totalorder %s322, %s325
      %p334 = scmp.eq.s32.totalorder %s29, 3
      %p335 = por %p333, %p334
      %p336 = scmp.ne.s32.totalorder %s325, %s326
      %p337 = scmp.eq.s32.totalorder %s29, 0
      %p338 = por %p336, %p337
      %p339 = scmp.ne.s32.totalorder %s325, %s326
      %p340 = scmp.eq.s32.totalorder %s30, 3
      %p341 = por %p339, %p340
      %p343 = scmp.ne.s32.totalorder %s326, %s342
      %p344 = scmp.eq.s32.totalorder %s30, 0
      %p345 = por %p343, %p344
      %p346 = scmp.le.s32.totalorder 1, %s24
      %p347 = scmp.lt.s32.totalorder %s24, 5
      %p348 = pnand %p346, %p347
      %p349 = pneg %p348
      // Predicated region
      $region9: #{gat_encoder_forward.1} parent=5 // pred_check
        _
      $region10: #{gat_encoder_forward.1} parent=5 // pred_check_branch
        %351 = sbr.rel (%p348) target = $region12
      $region11: #{gat_encoder_forward.1} parent=5 // pred_region
        %s352 = ssub.s32 %s24, 1
        // Predicated region
        $region13: #{gat_encoder_forward.1} parent=11 // pred_check
          %p353 = pneg %p83
        $region14: #{gat_encoder_forward.1} parent=11 // pred_check_branch
          %355 = sbr.rel (%p353) target = $region16
        $region15: #{gat_encoder_forward.1} parent=11 // pred_region
          %s357 = ssub.s32 512, 512
          %358 = vsyncadd [#allocation7], %s357
          %s359 = sshll.u32 [#allocation6], 4
          %s360 = int_to_ptr.vmem [resolvable:$true] %s359
          %365 = dma.hbm_to_vmem [thread:$0]  %s1, 512, %s360, [#allocation7], 128, 128, 8
        $region16: #{gat_encoder_forward.1} parent=11 // pred_fallthru
          _
        // Predicated region
        $region17: #{gat_encoder_forward.1} parent=11 // pred_check
          %p366 = pneg %p286
        $region18: #{gat_encoder_forward.1} parent=11 // pred_check_branch
          %368 = sbr.rel (%p366) target = $region20
        $region19: #{gat_encoder_forward.1} parent=11 // pred_region
          _
        $region20: #{gat_encoder_forward.1} parent=11 // pred_fallthru
          _
      $region12: #{gat_encoder_forward.1} parent=5 // pred_fallthru
        _
      %p369 = scmp.lt.s32.totalorder %s24, 4
      // Predicated region
      $region21: #{gat_encoder_forward.1} parent=5 // pred_check
        %p370 = pneg %p369
      $region22: #{gat_encoder_forward.1} parent=5 // pred_check_branch
        %372 = sbr.rel (%p370) target = $region24
      $region23: #{gat_encoder_forward.1} parent=5 // pred_region
        // Predicated region
        $region25: #{gat_encoder_forward.1} parent=23 // pred_check
          %p373 = pneg %p56
        $region26: #{gat_encoder_forward.1} parent=23 // pred_check_branch
          %375 = sbr.rel (%p373) target = $region28
        $region27: #{gat_encoder_forward.1} parent=23 // pred_region
          %s376 = sand.u32 %s24, 1
          %s377 = scalar_lea.sflag [#allocation4], %s376
          %s378 = sand.u32 %s46, 1
          %s379 = smul.addr %s378, 16
          %s380 = scalar_lea.vmem [#allocation3], %s379
          %s382 = ssub.s32 256, 256
          %383 = vsyncadd %s377, %s382
          %s384 = smul.addr %s31, 2
          %s385 = smul.addr %s384, 128
          %s386 = scalar_lea.hbm %s0, %s385
          %s387 = sshll.u32 %s380, 4
          %s388 = int_to_ptr.vmem [resolvable:$true] %s387
          %393 = dma.hbm_to_vmem [thread:$0]  %s386, 256, %s388, %s377, 128, 128, 8
        $region28: #{gat_encoder_forward.1} parent=23 // pred_fallthru
          _
        // Predicated region
        $region29: #{gat_encoder_forward.1} parent=23 // pred_check
          %p394 = pneg %p103
        $region30: #{gat_encoder_forward.1} parent=23 // pred_check_branch
          %396 = sbr.rel (%p394) target = $region32
        $region31: #{gat_encoder_forward.1} parent=23 // pred_region
          %s397 = sand.u32 %s24, 1
          %s398 = scalar_lea.sflag [#allocation4], %s397
          %s399 = sand.u32 %s93, 1
          %s400 = smul.addr %s399, 16
          %s401 = scalar_lea.vmem [#allocation8], %s400
          %s403 = ssub.s32 256, 256
          %404 = vsyncadd %s398, %s403
          %s405 = smul.addr %s32, 4
          %s406 = smul.addr %s405, 64
          %s407 = scalar_lea.hbm %s2, %s406
          %s408 = sshll.u32 %s401, 4
          %s409 = int_to_ptr.vmem [resolvable:$true] %s408
          %414 = dma.hbm_to_vmem [thread:$0]  %s407, 256, %s409, %s398, 64, 64, 4
        $region32: #{gat_encoder_forward.1} parent=23 // pred_fallthru
          _
        // Predicated region
        $region33: #{gat_encoder_forward.1} parent=23 // pred_check
          %p415 = pneg %p129
        $region34: #{gat_encoder_forward.1} parent=23 // pred_check_branch
          %417 = sbr.rel (%p415) target = $region36
        $region35: #{gat_encoder_forward.1} parent=23 // pred_region
          %p418 = scmp.lt.s32.totalorder %s32, 1
          %s419 = scalar_select %p418, %s32, 1
          %s420 = scalar_lea.vmem %s3, %s419
        $region36: #{gat_encoder_forward.1} parent=23 // pred_fallthru
          _
        // Predicated region
        $region37: #{gat_encoder_forward.1} parent=23 // pred_check
          %p421 = pneg %p155
        $region38: #{gat_encoder_forward.1} parent=23 // pred_check_branch
          %423 = sbr.rel (%p421) target = $region40
        $region39: #{gat_encoder_forward.1} parent=23 // pred_region
          %s424 = sand.u32 %s24, 1
          %s425 = scalar_lea.sflag [#allocation4], %s424
          %s426 = sand.u32 %s145, 1
          %s427 = smul.addr %s426, 4
          %s428 = scalar_lea.vmem [#allocation9], %s427
          %s430 = ssub.s32 64, 64
          %431 = vsyncadd %s425, %s430
          %s432 = smul.addr %s32, 4
          %s433 = smul.addr %s432, 16
          %s434 = scalar_lea.hbm %s4, %s433
          %s435 = sshll.u32 %s428, 4
          %s436 = int_to_ptr.vmem [resolvable:$true] %s435
          %441 = dma.hbm_to_vmem [thread:$0]  %s434, 64, %s436, %s425, 16, 16, 1
        $region40: #{gat_encoder_forward.1} parent=23 // pred_fallthru
          _
        // Predicated region
        $region41: #{gat_encoder_forward.1} parent=23 // pred_check
          %p442 = pneg %p181
        $region42: #{gat_encoder_forward.1} parent=23 // pred_check_branch
          %444 = sbr.rel (%p442) target = $region44
        $region43: #{gat_encoder_forward.1} parent=23 // pred_region
          %s445 = sand.u32 %s24, 1
          %s446 = scalar_lea.sflag [#allocation4], %s445
          %s447 = sand.u32 %s171, 1
          %s448 = smul.addr %s447, 4
          %s449 = scalar_lea.vmem [#allocation10], %s448
          %s451 = ssub.s32 64, 64
          %452 = vsyncadd %s446, %s451
          %s453 = smul.addr %s32, 4
          %s454 = smul.addr %s453, 16
          %s455 = scalar_lea.hbm %s5, %s454
          %s456 = sshll.u32 %s449, 4
          %s457 = int_to_ptr.vmem [resolvable:$true] %s456
          %462 = dma.hbm_to_vmem [thread:$0]  %s455, 64, %s457, %s446, 16, 16, 1
        $region44: #{gat_encoder_forward.1} parent=23 // pred_fallthru
          _
        // Predicated region
        $region45: #{gat_encoder_forward.1} parent=23 // pred_check
          %p463 = pneg %p207
        $region46: #{gat_encoder_forward.1} parent=23 // pred_check_branch
          %465 = sbr.rel (%p463) target = $region48
        $region47: #{gat_encoder_forward.1} parent=23 // pred_region
          %p466 = scmp.lt.s32.totalorder %s32, 1
          %s467 = scalar_select %p466, %s32, 1
          %s468 = smul.addr %s467, 4
          %s469 = smul.addr %s468, 4
          %s470 = scalar_lea.vmem %s6, %s469
        $region48: #{gat_encoder_forward.1} parent=23 // pred_fallthru
          _
        // Predicated region
        $region49: #{gat_encoder_forward.1} parent=23 // pred_check
          %p471 = pneg %p233
        $region50: #{gat_encoder_forward.1} parent=23 // pred_check_branch
          %473 = sbr.rel (%p471) target = $region52
        $region51: #{gat_encoder_forward.1} parent=23 // pred_region
          %p474 = scmp.lt.s32.totalorder %s32, 1
          %s475 = scalar_select %p474, %s32, 1
          %s476 = scalar_lea.vmem %s7, %s475
        $region52: #{gat_encoder_forward.1} parent=23 // pred_fallthru
          _
        // Predicated region
        $region53: #{gat_encoder_forward.1} parent=23 // pred_check
          %p477 = pneg %p259
        $region54: #{gat_encoder_forward.1} parent=23 // pred_check_branch
          %479 = sbr.rel (%p477) target = $region56
        $region55: #{gat_encoder_forward.1} parent=23 // pred_region
          %s480 = sand.u32 %s24, 1
          %s481 = scalar_lea.sflag [#allocation4], %s480
          %s482 = sand.u32 %s249, 1
          %s483 = smul.addr %s482, 16
          %s484 = scalar_lea.vmem [#allocation11], %s483
          %s486 = ssub.s32 256, 256
          %487 = vsyncadd %s481, %s486
          %s488 = smul.addr %s32, 4
          %s489 = smul.addr %s488, 64
          %s490 = scalar_lea.hbm %s8, %s489
          %s491 = sshll.u32 %s484, 4
          %s492 = int_to_ptr.vmem [resolvable:$true] %s491
          %497 = dma.hbm_to_vmem [thread:$0]  %s490, 256, %s492, %s481, 64, 64, 4
        $region56: #{gat_encoder_forward.1} parent=23 // pred_fallthru
          _
        // Predicated region
        $region57: #{gat_encoder_forward.1} parent=23 // pred_check
          %p498 = pneg %p306
        $region58: #{gat_encoder_forward.1} parent=23 // pred_check_branch
          %500 = sbr.rel (%p498) target = $region60
        $region59: #{gat_encoder_forward.1} parent=23 // pred_region
          %p501 = scmp.lt.s32.totalorder %s32, 1
          %s502 = scalar_select %p501, %s32, 1
          %s503 = scalar_lea.vmem %s10, %s502
        $region60: #{gat_encoder_forward.1} parent=23 // pred_fallthru
          _
      $region24: #{gat_encoder_forward.1} parent=5 // pred_fallthru
        _
      %p504 = scmp.le.s32.totalorder 1, %s24
      %p505 = scmp.lt.s32.totalorder %s24, 5
      %p506 = pnand %p504, %p505
      %p507 = pneg %p506
      // Predicated region
      $region61: #{gat_encoder_forward.1} parent=5 // pred_check
        _
      $region62: #{gat_encoder_forward.1} parent=5 // pred_check_branch
        %509 = sbr.rel (%p506) target = $region64
      $region63: #{gat_encoder_forward.1} parent=5 // pred_region
        %s510 = ssub.s32 %s24, 1
        %s511 = sand.u32 %s29, 1
        %s512 = scalar_lea.sflag [#allocation4], %s511
        %s513 = sand.u32 %s49, 1
        %s514 = smul.addr %s513, 16
        %s515 = scalar_lea.vmem [#allocation3], %s514
        // Predicated region
        $region65: #{gat_encoder_forward.1} parent=63 // pred_check
          %p516 = pneg %p62
        $region66: #{gat_encoder_forward.1} parent=63 // pred_check_branch
          %518 = sbr.rel (%p516) target = $region68
        $region67: #{gat_encoder_forward.1} parent=63 // pred_region
          %519 = dma.done %s512, 256
        $region68: #{gat_encoder_forward.1} parent=63 // pred_fallthru
          _
        // Predicated region
        $region69: #{gat_encoder_forward.1} parent=63 // pred_check
          %p520 = pneg %p83
        $region70: #{gat_encoder_forward.1} parent=63 // pred_check_branch
          %522 = sbr.rel (%p520) target = $region72
        $region71: #{gat_encoder_forward.1} parent=63 // pred_region
          %523 = dma.done [#allocation7], 512
        $region72: #{gat_encoder_forward.1} parent=63 // pred_fallthru
          _
        %s524 = sand.u32 %s29, 1
        %s525 = scalar_lea.sflag [#allocation4], %s524
        %s526 = sand.u32 %s96, 1
        %s527 = smul.addr %s526, 16
        %s528 = scalar_lea.vmem [#allocation8], %s527
        // Predicated region
        $region73: #{gat_encoder_forward.1} parent=63 // pred_check
          %p529 = pneg %p109
        $region74: #{gat_encoder_forward.1} parent=63 // pred_check_branch
          %531 = sbr.rel (%p529) target = $region76
        $region75: #{gat_encoder_forward.1} parent=63 // pred_region
          %532 = dma.done %s525, 256
        $region76: #{gat_encoder_forward.1} parent=63 // pred_fallthru
          _
        %s533 = sand.u32 %s29, 1
        %s534 = scalar_lea.sflag [#allocation4], %s533
        %s535 = sand.u32 %s148, 1
        %s536 = smul.addr %s535, 4
        %s537 = scalar_lea.vmem [#allocation9], %s536
        // Predicated region
        $region77: #{gat_encoder_forward.1} parent=63 // pred_check
          %p538 = pneg %p161
        $region78: #{gat_encoder_forward.1} parent=63 // pred_check_branch
          %540 = sbr.rel (%p538) target = $region80
        $region79: #{gat_encoder_forward.1} parent=63 // pred_region
          %541 = dma.done %s534, 64
        $region80: #{gat_encoder_forward.1} parent=63 // pred_fallthru
          _
        %s542 = sand.u32 %s29, 1
        %s543 = scalar_lea.sflag [#allocation4], %s542
        %s544 = sand.u32 %s174, 1
        %s545 = smul.addr %s544, 4
        %s546 = scalar_lea.vmem [#allocation10], %s545
        // Predicated region
        $region81: #{gat_encoder_forward.1} parent=63 // pred_check
          %p547 = pneg %p187
        $region82: #{gat_encoder_forward.1} parent=63 // pred_check_branch
          %549 = sbr.rel (%p547) target = $region84
        $region83: #{gat_encoder_forward.1} parent=63 // pred_region
          %550 = dma.done %s543, 64
        $region84: #{gat_encoder_forward.1} parent=63 // pred_fallthru
          _
        %s551 = sand.u32 %s29, 1
        %s552 = scalar_lea.sflag [#allocation4], %s551
        %s553 = sand.u32 %s252, 1
        %s554 = smul.addr %s553, 16
        %s555 = scalar_lea.vmem [#allocation11], %s554
        // Predicated region
        $region85: #{gat_encoder_forward.1} parent=63 // pred_check
          %p556 = pneg %p265
        $region86: #{gat_encoder_forward.1} parent=63 // pred_check_branch
          %558 = sbr.rel (%p556) target = $region88
        $region87: #{gat_encoder_forward.1} parent=63 // pred_region
          %559 = dma.done %s552, 256
        $region88: #{gat_encoder_forward.1} parent=63 // pred_fallthru
          _
        %s560 = sand.u32 %s29, 1
        %s561 = scalar_lea.sflag [#allocation4], %s560
        %s562 = sand.u32 %s49, 1
        %s563 = smul.addr %s562, 16
        %s564 = scalar_lea.vmem [#allocation3], %s563
        %p565 = pneg %p62
        %p566 = pneg %p59
        %p567 = pneg %p83
        %p568 = pneg %p80
        %s569 = sand.u32 %s29, 1
        %s570 = scalar_lea.sflag [#allocation4], %s569
        %s571 = sand.u32 %s96, 1
        %s572 = smul.addr %s571, 16
        %s573 = scalar_lea.vmem [#allocation8], %s572
        %p574 = pneg %p109
        %p575 = pneg %p106
        %p576 = scmp.lt.s32.totalorder %s34, 1
        %s577 = scalar_select %p576, %s34, 1
        %s578 = scalar_lea.vmem %s3, %s577
        %p579 = pneg %p135
        %p580 = pneg %p132
        %s581 = sand.u32 %s29, 1
        %s582 = scalar_lea.sflag [#allocation4], %s581
        %s583 = sand.u32 %s148, 1
        %s584 = smul.addr %s583, 4
        %s585 = scalar_lea.vmem [#allocation9], %s584
        %p586 = pneg %p161
        %p587 = pneg %p158
        %s588 = sand.u32 %s29, 1
        %s589 = scalar_lea.sflag [#allocation4], %s588
        %s590 = sand.u32 %s174, 1
        %s591 = smul.addr %s590, 4
        %s592 = scalar_lea.vmem [#allocation10], %s591
        %p593 = pneg %p187
        %p594 = pneg %p184
        %p595 = scmp.lt.s32.totalorder %s34, 1
        %s596 = scalar_select %p595, %s34, 1
        %s597 = smul.addr %s596, 4
        %s598 = smul.addr %s597, 4
        %s599 = scalar_lea.vmem %s6, %s598
        %p600 = pneg %p213
        %p601 = pneg %p210
        %p602 = scmp.lt.s32.totalorder %s34, 1
        %s603 = scalar_select %p602, %s34, 1
        %s604 = scalar_lea.vmem %s7, %s603
        %p605 = pneg %p239
        %p606 = pneg %p236
        %s607 = sand.u32 %s29, 1
        %s608 = scalar_lea.sflag [#allocation4], %s607
        %s609 = sand.u32 %s252, 1
        %s610 = smul.addr %s609, 16
        %s611 = scalar_lea.vmem [#allocation11], %s610
        %p612 = pneg %p265
        %p613 = pneg %p262
        %p614 = pneg %p286
        %p615 = pneg %p283
        %p616 = scmp.lt.s32.totalorder %s34, 1
        %s617 = scalar_select %p616, %s34, 1
        %s618 = scalar_lea.vmem %s10, %s617
        %p619 = pneg %p312
        %p620 = pneg %p309
        %p621 = pneg %p338
        %p622 = pneg %p335
        %s623 = sand.u32 %s325, 1
        %s624 = scalar_lea.sflag [#allocation5], %s623
        %s625 = sand.u32 %s325, 1
        %s626 = smul.addr %s625, 16
        %s627 = scalar_lea.vmem [#allocation12], %s626
        %p628 = scmp.lt.s32.totalorder %s34, 1
        %s629 = scalar_select %p628, %s34, 1
        %s630 = scalar_lea.vmem %s3, %s629
        %p631 = scmp.lt.s32.totalorder %s34, 1
        %s632 = scalar_select %p631, %s34, 1
        %s633 = smul.addr %s632, 4
        %s634 = smul.addr %s633, 4
        %s635 = scalar_lea.vmem %s6, %s634
        %p636 = scmp.lt.s32.totalorder %s34, 1
        %s637 = scalar_select %p636, %s34, 1
        %s638 = scalar_lea.vmem %s7, %s637
        %p639 = scmp.lt.s32.totalorder %s34, 1
        %s640 = scalar_select %p639, %s34, 1
        %s641 = scalar_lea.vmem %s10, %s640
        %p643 = scmp.eq.s32.totalorder %s34, 0
        // Predicated region
        $region89: #{gat_encoder_forward.1} parent=63 // pred_check
          %p644 = pneg %p643
        $region90: #{gat_encoder_forward.1} parent=63 // pred_check_branch
          %646 = sbr.rel (%p644) target = $region92
        $region91: #{gat_encoder_forward.1} parent=63 // pred_region
          %v647 = vld [vmem:[%s515] sm:$0xff]
          %v648 = vld [vmem:[%s515 + $0x8] sm:$0xff]
          %vm649 = vcmask 261120
          %650 = vst.msk [vmem:[#allocation2] sm:$0xff] %vm649, %v647
          %651 = vst.msk [vmem:[#allocation2 + $0x8] sm:$0xff] %vm649, %v648
          %652 = vst.msk [vmem:[%s627] sm:$0xff] %vm649, 0.0
          %653 = vst.msk [vmem:[%s627 + $0x8] sm:$0xff] %vm649, 0.0
        $region92: #{gat_encoder_forward.1} parent=63 // pred_fallthru
          _
        %v654 = vld [vmem:[#allocation6] sm:$0xff]
        %v655 = vld [vmem:[#allocation6 + $0x8] sm:$0xff]
        %s656 = scalar_lea.vmem [#allocation6], 16
        %v657 = vld [vmem:[%s656] sm:$0xff]
        %v658 = vld [vmem:[%s656 + $0x8] sm:$0xff]
        %v659 = vld [vmem:[#allocation2] sm:$0xff]
        %v660 = vld [vmem:[#allocation2 + $0x8] sm:$0xff]
        %v661 = vpack.c.bf16 %v660, %v659
        %v662 = vld [vmem:[%s528] sm:$0xf]
        %v663 = vld [vmem:[%s528 + $0x4] sm:$0xf]
        %v664 = vld [vmem:[%s528 + $0x8] sm:$0xf]
        %v665 = vld [vmem:[%s528 + $0xc] sm:$0xf]
        %v666 = vld [vmem:[%s630] sm:$0x1]
        %v668 = vlaneseq
        %v669 = vshrl.u32 %v668, 7
        %v670 = vsub.s32 0, %v669
        %v671 = vrot.slane %v666, %v670
        %v677 = vunpack.c.l.b16 %v662
        %v678 = vunpack.c.l.b16 %v663
        %v679 = vunpack.c.l.b16 %v664
        %v680 = vunpack.c.l.b16 %v665
        %v681 = vpack.c.b16 %v678, %v677
        %v682 = vpack.c.b16 %v680, %v679
        %vm685 = vcmask 261120
        %v687 = vsel %vm685, %v661, 0
        %689 = vmatprep.subr.bf16.mxu0 0
        %690 = vmatpush1.bf16.msra.mxu0 %v681
        %691 = vmatprep.subr.bf16.mxu0 0
        %692 = vmatpush1.bf16.msra.mxu0 %v682
        %693 = vmatprep.subr.bf16.mxu0 0
        %694 = vmatpush1.bf16.msra.mxu0 0
        %695 = vmatprep.subr.bf16.mxu0 0
        %696 = vmatpush1.bf16.msra.mxu0 0
        %697 = vmatprep.subr.bf16.mxu0 0
        %698 = vmatpush1.bf16.msra.mxu0 0
        %699 = vmatprep.subr.bf16.mxu0 0
        %700 = vmatpush1.bf16.msra.mxu0 0
        %701 = vmatprep.subr.bf16.mxu0 0
        %702 = vmatpush1.bf16.msra.mxu0 0
        %703 = vmatprep.subr.bf16.mxu0 0
        %704 = vmatpush1.bf16.msra.mxu0 0
        %705 = vmatprep.subr.bf16.mxu0 0
        %706 = vmatpush1.bf16.msra.mxu0 0
        %707 = vmatprep.subr.bf16.mxu0 0
        %708 = vmatpush1.bf16.msra.mxu0 0
        %709 = vmatprep.subr.bf16.mxu0 0
        %710 = vmatpush1.bf16.msra.mxu0 0
        %711 = vmatprep.subr.bf16.mxu0 0
        %712 = vmatpush1.bf16.msra.mxu0 0
        %713 = vmatprep.subr.bf16.mxu0 0
        %714 = vmatpush1.bf16.msra.mxu0 0
        %715 = vmatprep.subr.bf16.mxu0 0
        %716 = vmatpush1.bf16.msra.mxu0 0
        %717 = vmatprep.subr.bf16.mxu0 0
        %718 = vmatpush1.bf16.msra.mxu0 0
        %719 = vmatprep.subr.bf16.mxu0 0
        %720 = vmatpush1.bf16.msra.mxu0 0
        %721 = vmatprep.mubr.bf16.mxu0 0
        %722 = vmatmul.mubr.bf16.gmra.mrb[0].mxu0 %v687
        %v723 = vpop.f32.mrb[0].mxu0
        %v724 = vadd.f32 %v671, %v723
        %v725 = vpop.f32.mrb[0].mxu0
        %v726 = vpop.f32.mrb[0].mxu0
        %v727 = vadd.f32 %v671, %v726
        %v728 = vpop.f32.mrb[0].mxu0
        %729 = vdwg.mxu0
        %732 = vrot.lane.b32.xlu0 %v724, 120
        %v733 = vpop.permute.xlu0 %732
        %734 = vrot.lane.b32.xlu0 %v727, 120
        %v735 = vpop.permute.xlu0 %734
        %738 = vrot.lane.b32.xlu0 %v724, 112
        %v739 = vpop.permute.xlu0 %738
        %740 = vrot.lane.b32.xlu0 %v727, 112
        %v741 = vpop.permute.xlu0 %740
        %744 = vrot.lane.b32.xlu0 %v724, 104
        %v745 = vpop.permute.xlu0 %744
        %746 = vrot.lane.b32.xlu0 %v727, 104
        %v747 = vpop.permute.xlu0 %746
        %v750 = vpack.c.bf16 %v727, %v724
        %v751 = vpack.c.bf16 %v735, %v733
        %v752 = vpack.c.bf16 %v741, %v739
        %v753 = vpack.c.bf16 %v747, %v745
        %v754 = vld [vmem:[%s546] sm:$0x1]
        %v755 = vld [vmem:[%s546 + $0x1] sm:$0x1]
        %v756 = vld [vmem:[%s546 + $0x2] sm:$0x1]
        %v757 = vld [vmem:[%s546 + $0x3] sm:$0x1]
        %v762 = vlaneseq
        %v763 = vshrl.u32 %v762, 7
        %v764 = vsub.s32 0, %v763
        %v765 = vrot.slane %v754, %v764
        %v766 = vlaneseq
        %v767 = vshrl.u32 %v766, 7
        %v768 = vsub.s32 0, %v767
        %v769 = vrot.slane %v755, %v768
        %v770 = vlaneseq
        %v771 = vshrl.u32 %v770, 7
        %v772 = vsub.s32 0, %v771
        %v773 = vrot.slane %v756, %v772
        %v774 = vlaneseq
        %v775 = vshrl.u32 %v774, 7
        %v776 = vsub.s32 0, %v775
        %v777 = vrot.slane %v757, %v776
        %v782 = vmul.f32 %v724, %v765
        %v783 = vmul.f32 %v727, %v765
        %v784 = vmul.f32 %v733, %v769
        %v785 = vmul.f32 %v735, %v769
        %v786 = vmul.f32 %v739, %v773
        %v787 = vmul.f32 %v741, %v773
        %v788 = vmul.f32 %v745, %v777
        %v789 = vmul.f32 %v747, %v777
        %vm790 = vcmask 64512
        %v791 = vsel %vm790, %v782, 0.0
        %792 = vadd.xlane.f32.xlu0 %v791
        %v793 = vpop.xlane.xlu0 %792
        %v794 = vsel %vm790, %v783, 0.0
        %795 = vadd.xlane.f32.xlu0 %v794
        %v796 = vpop.xlane.xlu0 %795
        %v797 = vsel %vm790, %v784, 0.0
        %798 = vadd.xlane.f32.xlu0 %v797
        %v799 = vpop.xlane.xlu0 %798
        %v800 = vsel %vm790, %v785, 0.0
        %801 = vadd.xlane.f32.xlu0 %v800
        %v802 = vpop.xlane.xlu0 %801
        %v803 = vsel %vm790, %v786, 0.0
        %804 = vadd.xlane.f32.xlu0 %v803
        %v805 = vpop.xlane.xlu0 %804
        %v806 = vsel %vm790, %v787, 0.0
        %807 = vadd.xlane.f32.xlu0 %v806
        %v808 = vpop.xlane.xlu0 %807
        %v809 = vsel %vm790, %v788, 0.0
        %810 = vadd.xlane.f32.xlu0 %v809
        %v811 = vpop.xlane.xlu0 %810
        %v812 = vsel %vm790, %v789, 0.0
        %813 = vadd.xlane.f32.xlu0 %v812
        %v814 = vpop.xlane.xlu0 %813
        %v815 = vld [vmem:[%s537] sm:$0x1]
        %v816 = vld [vmem:[%s537 + $0x1] sm:$0x1]
        %v817 = vld [vmem:[%s537 + $0x2] sm:$0x1]
        %v818 = vld [vmem:[%s537 + $0x3] sm:$0x1]
        %v820 = vsel %vm790, %v815, 0
        %v822 = vsel %vm790, %v724, 0
        %v824 = vsel %vm790, %v727, 0
        %826 = vmatprep.subr.mxu0 0.0
        %827 = vmatpush1.xpose.msra.mxu0 %v822
        %828 = vmatprep.subr.mxu0 0.0
        %829 = vmatpush1.xpose.msra.mxu0 %v824
        %830 = vmatprep.subr.mxu0 0.0
        %831 = vmatpush1.xpose.msra.mxu0 0.0
        %832 = vmatprep.subr.mxu0 0.0
        %833 = vmatpush1.xpose.msra.mxu0 0.0
        %834 = vmatprep.subr.mxu0 0.0
        %835 = vmatpush1.xpose.msra.mxu0 0.0
        %836 = vmatprep.subr.mxu0 0.0
        %837 = vmatpush1.xpose.msra.mxu0 0.0
        %838 = vmatprep.subr.mxu0 0.0
        %839 = vmatpush1.xpose.msra.mxu0 0.0
        %840 = vmatprep.subr.mxu0 0.0
        %841 = vmatpush1.xpose.msra.mxu0 0.0
        %842 = vmatprep.subr.mxu0 0.0
        %843 = vmatpush1.xpose.msra.mxu0 0.0
        %844 = vmatprep.subr.mxu0 0.0
        %845 = vmatpush1.xpose.msra.mxu0 0.0
        %846 = vmatprep.subr.mxu0 0.0
        %847 = vmatpush1.xpose.msra.mxu0 0.0
        %848 = vmatprep.subr.mxu0 0.0
        %849 = vmatpush1.xpose.msra.mxu0 0.0
        %850 = vmatprep.subr.mxu0 0.0
        %851 = vmatpush1.xpose.msra.mxu0 0.0
        %852 = vmatprep.subr.mxu0 0.0
        %853 = vmatpush1.xpose.msra.mxu0 0.0
        %854 = vmatprep.subr.mxu0 0.0
        %855 = vmatpush1.xpose.msra.mxu0 0.0
        %856 = vmatprep.subr.mxu0 0.0
        %857 = vmatpush1.xpose.msra.mxu0 0.0
        %858 = vmatprep.subr.mxu0 0.0
        %859 = vmatpush1.xpose.msra.mxu0 0.0
        %860 = vmatprep.subr.mxu0 0.0
        %861 = vmatpush1.xpose.msra.mxu0 0.0
        %862 = vmatprep.subr.mxu0 0.0
        %863 = vmatpush1.xpose.msra.mxu0 0.0
        %864 = vmatprep.subr.mxu0 0.0
        %865 = vmatpush1.xpose.msra.mxu0 0.0
        %866 = vmatprep.subr.mxu0 0.0
        %867 = vmatpush1.xpose.msra.mxu0 0.0
        %868 = vmatprep.subr.mxu0 0.0
        %869 = vmatpush1.xpose.msra.mxu0 0.0
        %870 = vmatprep.subr.mxu0 0.0
        %871 = vmatpush1.xpose.msra.mxu0 0.0
        %872 = vmatprep.subr.mxu0 0.0
        %873 = vmatpush1.xpose.msra.mxu0 0.0
        %874 = vmatprep.subr.mxu0 0.0
        %875 = vmatpush1.xpose.msra.mxu0 0.0
        %876 = vmatprep.subr.mxu0 0.0
        %877 = vmatpush1.xpose.msra.mxu0 0.0
        %878 = vmatprep.subr.mxu0 0.0
        %879 = vmatpush1.xpose.msra.mxu0 0.0
        %880 = vmatprep.subr.mxu0 0.0
        %881 = vmatpush1.xpose.msra.mxu0 0.0
        %882 = vmatprep.subr.mxu0 0.0
        %883 = vmatpush1.xpose.msra.mxu0 0.0
        %884 = vmatprep.subr.mxu0 0.0
        %885 = vmatpush1.xpose.msra.mxu0 0.0
        %886 = vmatprep.subr.mxu0 0.0
        %887 = vmatpush1.xpose.msra.mxu0 0.0
        %888 = vmatprep.subr.mxu0 0.0
        %889 = vmatpush1.xpose.msra.mxu0 0.0
        %890 = vmatprep.mubr.f32.mxu0 0.0
        %891 = vmatmul.mubr.f32.gmra.mrb[0].mxu0 %v820
        %v892 = vpop.f32.mrb[0].mxu0
        %v893 = vadd.f32 0.0, %v892
        %v894 = vpop.f32.mrb[0].mxu0
        %895 = vdwg.mxu0
        %v897 = vsel %vm790, %v816, 0
        %v899 = vsel %vm790, %v733, 0
        %v901 = vsel %vm790, %v735, 0
        %903 = vmatprep.subr.mxu0 0.0
        %904 = vmatpush1.xpose.msra.mxu0 %v899
        %905 = vmatprep.subr.mxu0 0.0
        %906 = vmatpush1.xpose.msra.mxu0 %v901
        %907 = vmatprep.subr.mxu0 0.0
        %908 = vmatpush1.xpose.msra.mxu0 0.0
        %909 = vmatprep.subr.mxu0 0.0
        %910 = vmatpush1.xpose.msra.mxu0 0.0
        %911 = vmatprep.subr.mxu0 0.0
        %912 = vmatpush1.xpose.msra.mxu0 0.0
        %913 = vmatprep.subr.mxu0 0.0
        %914 = vmatpush1.xpose.msra.mxu0 0.0
        %915 = vmatprep.subr.mxu0 0.0
        %916 = vmatpush1.xpose.msra.mxu0 0.0
        %917 = vmatprep.subr.mxu0 0.0
        %918 = vmatpush1.xpose.msra.mxu0 0.0
        %919 = vmatprep.subr.mxu0 0.0
        %920 = vmatpush1.xpose.msra.mxu0 0.0
        %921 = vmatprep.subr.mxu0 0.0
        %922 = vmatpush1.xpose.msra.mxu0 0.0
        %923 = vmatprep.subr.mxu0 0.0
        %924 = vmatpush1.xpose.msra.mxu0 0.0
        %925 = vmatprep.subr.mxu0 0.0
        %926 = vmatpush1.xpose.msra.mxu0 0.0
        %927 = vmatprep.subr.mxu0 0.0
        %928 = vmatpush1.xpose.msra.mxu0 0.0
        %929 = vmatprep.subr.mxu0 0.0
        %930 = vmatpush1.xpose.msra.mxu0 0.0
        %931 = vmatprep.subr.mxu0 0.0
        %932 = vmatpush1.xpose.msra.mxu0 0.0
        %933 = vmatprep.subr.mxu0 0.0
        %934 = vmatpush1.xpose.msra.mxu0 0.0
        %935 = vmatprep.subr.mxu0 0.0
        %936 = vmatpush1.xpose.msra.mxu0 0.0
        %937 = vmatprep.subr.mxu0 0.0
        %938 = vmatpush1.xpose.msra.mxu0 0.0
        %939 = vmatprep.subr.mxu0 0.0
        %940 = vmatpush1.xpose.msra.mxu0 0.0
        %941 = vmatprep.subr.mxu0 0.0
        %942 = vmatpush1.xpose.msra.mxu0 0.0
        %943 = vmatprep.subr.mxu0 0.0
        %944 = vmatpush1.xpose.msra.mxu0 0.0
        %945 = vmatprep.subr.mxu0 0.0
        %946 = vmatpush1.xpose.msra.mxu0 0.0
        %947 = vmatprep.subr.mxu0 0.0
        %948 = vmatpush1.xpose.msra.mxu0 0.0
        %949 = vmatprep.subr.mxu0 0.0
        %950 = vmatpush1.xpose.msra.mxu0 0.0
        %951 = vmatprep.subr.mxu0 0.0
        %952 = vmatpush1.xpose.msra.mxu0 0.0
        %953 = vmatprep.subr.mxu0 0.0
        %954 = vmatpush1.xpose.msra.mxu0 0.0
        %955 = vmatprep.subr.mxu0 0.0
        %956 = vmatpush1.xpose.msra.mxu0 0.0
        %957 = vmatprep.subr.mxu0 0.0
        %958 = vmatpush1.xpose.msra.mxu0 0.0
        %959 = vmatprep.subr.mxu0 0.0
        %960 = vmatpush1.xpose.msra.mxu0 0.0
        %961 = vmatprep.subr.mxu0 0.0
        %962 = vmatpush1.xpose.msra.mxu0 0.0
        %963 = vmatprep.subr.mxu0 0.0
        %964 = vmatpush1.xpose.msra.mxu0 0.0
        %965 = vmatprep.subr.mxu0 0.0
        %966 = vmatpush1.xpose.msra.mxu0 0.0
        %967 = vmatprep.mubr.f32.mxu0 0.0
        %968 = vmatmul.mubr.f32.gmra.mrb[0].mxu0 %v897
        %v969 = vpop.f32.mrb[0].mxu0
        %v970 = vadd.f32 0.0, %v969
        %v971 = vpop.f32.mrb[0].mxu0
        %972 = vdwg.mxu0
        %v974 = vsel %vm790, %v817, 0
        %v976 = vsel %vm790, %v739, 0
        %v978 = vsel %vm790, %v741, 0
        %980 = vmatprep.subr.mxu0 0.0
        %981 = vmatpush1.xpose.msra.mxu0 %v976
        %982 = vmatprep.subr.mxu0 0.0
        %983 = vmatpush1.xpose.msra.mxu0 %v978
        %984 = vmatprep.subr.mxu0 0.0
        %985 = vmatpush1.xpose.msra.mxu0 0.0
        %986 = vmatprep.subr.mxu0 0.0
        %987 = vmatpush1.xpose.msra.mxu0 0.0
        %988 = vmatprep.subr.mxu0 0.0
        %989 = vmatpush1.xpose.msra.mxu0 0.0
        %990 = vmatprep.subr.mxu0 0.0
        %991 = vmatpush1.xpose.msra.mxu0 0.0
        %992 = vmatprep.subr.mxu0 0.0
        %993 = vmatpush1.xpose.msra.mxu0 0.0
        %994 = vmatprep.subr.mxu0 0.0
        %995 = vmatpush1.xpose.msra.mxu0 0.0
        %996 = vmatprep.subr.mxu0 0.0
        %997 = vmatpush1.xpose.msra.mxu0 0.0
        %998 = vmatprep.subr.mxu0 0.0
        %999 = vmatpush1.xpose.msra.mxu0 0.0
        %1000 = vmatprep.subr.mxu0 0.0
        %1001 = vmatpush1.xpose.msra.mxu0 0.0
        %1002 = vmatprep.subr.mxu0 0.0
        %1003 = vmatpush1.xpose.msra.mxu0 0.0
        %1004 = vmatprep.subr.mxu0 0.0
        %1005 = vmatpush1.xpose.msra.mxu0 0.0
        %1006 = vmatprep.subr.mxu0 0.0
        %1007 = vmatpush1.xpose.msra.mxu0 0.0
        %1008 = vmatprep.subr.mxu0 0.0
        %1009 = vmatpush1.xpose.msra.mxu0 0.0
        %1010 = vmatprep.subr.mxu0 0.0
        %1011 = vmatpush1.xpose.msra.mxu0 0.0
        %1012 = vmatprep.subr.mxu0 0.0
        %1013 = vmatpush1.xpose.msra.mxu0 0.0
        %1014 = vmatprep.subr.mxu0 0.0
        %1015 = vmatpush1.xpose.msra.mxu0 0.0
        %1016 = vmatprep.subr.mxu0 0.0
        %1017 = vmatpush1.xpose.msra.mxu0 0.0
        %1018 = vmatprep.subr.mxu0 0.0
        %1019 = vmatpush1.xpose.msra.mxu0 0.0
        %1020 = vmatprep.subr.mxu0 0.0
        %1021 = vmatpush1.xpose.msra.mxu0 0.0
        %1022 = vmatprep.subr.mxu0 0.0
        %1023 = vmatpush1.xpose.msra.mxu0 0.0
        %1024 = vmatprep.subr.mxu0 0.0
        %1025 = vmatpush1.xpose.msra.mxu0 0.0
        %1026 = vmatprep.subr.mxu0 0.0
        %1027 = vmatpush1.xpose.msra.mxu0 0.0
        %1028 = vmatprep.subr.mxu0 0.0
        %1029 = vmatpush1.xpose.msra.mxu0 0.0
        %1030 = vmatprep.subr.mxu0 0.0
        %1031 = vmatpush1.xpose.msra.mxu0 0.0
        %1032 = vmatprep.subr.mxu0 0.0
        %1033 = vmatpush1.xpose.msra.mxu0 0.0
        %1034 = vmatprep.subr.mxu0 0.0
        %1035 = vmatpush1.xpose.msra.mxu0 0.0
        %1036 = vmatprep.subr.mxu0 0.0
        %1037 = vmatpush1.xpose.msra.mxu0 0.0
        %1038 = vmatprep.subr.mxu0 0.0
        %1039 = vmatpush1.xpose.msra.mxu0 0.0
        %1040 = vmatprep.subr.mxu0 0.0
        %1041 = vmatpush1.xpose.msra.mxu0 0.0
        %1042 = vmatprep.subr.mxu0 0.0
        %1043 = vmatpush1.xpose.msra.mxu0 0.0
        %1044 = vmatprep.mubr.f32.mxu0 0.0
        %1045 = vmatmul.mubr.f32.gmra.mrb[0].mxu0 %v974
        %v1046 = vpop.f32.mrb[0].mxu0
        %v1047 = vadd.f32 0.0, %v1046
        %v1048 = vpop.f32.mrb[0].mxu0
        %1049 = vdwg.mxu0
        %v1051 = vsel %vm790, %v818, 0
        %v1053 = vsel %vm790, %v745, 0
        %v1055 = vsel %vm790, %v747, 0
        %1057 = vmatprep.subr.mxu0 0.0
        %1058 = vmatpush1.xpose.msra.mxu0 %v1053
        %1059 = vmatprep.subr.mxu0 0.0
        %1060 = vmatpush1.xpose.msra.mxu0 %v1055
        %1061 = vmatprep.subr.mxu0 0.0
        %1062 = vmatpush1.xpose.msra.mxu0 0.0
        %1063 = vmatprep.subr.mxu0 0.0
        %1064 = vmatpush1.xpose.msra.mxu0 0.0
        %1065 = vmatprep.subr.mxu0 0.0
        %1066 = vmatpush1.xpose.msra.mxu0 0.0
        %1067 = vmatprep.subr.mxu0 0.0
        %1068 = vmatpush1.xpose.msra.mxu0 0.0
        %1069 = vmatprep.subr.mxu0 0.0
        %1070 = vmatpush1.xpose.msra.mxu0 0.0
        %1071 = vmatprep.subr.mxu0 0.0
        %1072 = vmatpush1.xpose.msra.mxu0 0.0
        %1073 = vmatprep.subr.mxu0 0.0
        %1074 = vmatpush1.xpose.msra.mxu0 0.0
        %1075 = vmatprep.subr.mxu0 0.0
        %1076 = vmatpush1.xpose.msra.mxu0 0.0
        %1077 = vmatprep.subr.mxu0 0.0
        %1078 = vmatpush1.xpose.msra.mxu0 0.0
        %1079 = vmatprep.subr.mxu0 0.0
        %1080 = vmatpush1.xpose.msra.mxu0 0.0
        %1081 = vmatprep.subr.mxu0 0.0
        %1082 = vmatpush1.xpose.msra.mxu0 0.0
        %1083 = vmatprep.subr.mxu0 0.0
        %1084 = vmatpush1.xpose.msra.mxu0 0.0
        %1085 = vmatprep.subr.mxu0 0.0
        %1086 = vmatpush1.xpose.msra.mxu0 0.0
        %1087 = vmatprep.subr.mxu0 0.0
        %1088 = vmatpush1.xpose.msra.mxu0 0.0
        %1089 = vmatprep.subr.mxu0 0.0
        %1090 = vmatpush1.xpose.msra.mxu0 0.0
        %1091 = vmatprep.subr.mxu0 0.0
        %1092 = vmatpush1.xpose.msra.mxu0 0.0
        %1093 = vmatprep.subr.mxu0 0.0
        %1094 = vmatpush1.xpose.msra.mxu0 0.0
        %1095 = vmatprep.subr.mxu0 0.0
        %1096 = vmatpush1.xpose.msra.mxu0 0.0
        %1097 = vmatprep.subr.mxu0 0.0
        %1098 = vmatpush1.xpose.msra.mxu0 0.0
        %1099 = vmatprep.subr.mxu0 0.0
        %1100 = vmatpush1.xpose.msra.mxu0 0.0
        %1101 = vmatprep.subr.mxu0 0.0
        %1102 = vmatpush1.xpose.msra.mxu0 0.0
        %1103 = vmatprep.subr.mxu0 0.0
        %1104 = vmatpush1.xpose.msra.mxu0 0.0
        %1105 = vmatprep.subr.mxu0 0.0
        %1106 = vmatpush1.xpose.msra.mxu0 0.0
        %1107 = vmatprep.subr.mxu0 0.0
        %1108 = vmatpush1.xpose.msra.mxu0 0.0
        %1109 = vmatprep.subr.mxu0 0.0
        %1110 = vmatpush1.xpose.msra.mxu0 0.0
        %1111 = vmatprep.subr.mxu0 0.0
        %1112 = vmatpush1.xpose.msra.mxu0 0.0
        %1113 = vmatprep.subr.mxu0 0.0
        %1114 = vmatpush1.xpose.msra.mxu0 0.0
        %1115 = vmatprep.subr.mxu0 0.0
        %1116 = vmatpush1.xpose.msra.mxu0 0.0
        %1117 = vmatprep.subr.mxu0 0.0
        %1118 = vmatpush1.xpose.msra.mxu0 0.0
        %1119 = vmatprep.subr.mxu0 0.0
        %1120 = vmatpush1.xpose.msra.mxu0 0.0
        %1121 = vmatprep.mubr.f32.mxu0 0.0
        %1122 = vmatmul.mubr.f32.gmra.mrb[0].mxu0 %v1051
        %v1123 = vpop.f32.mrb[0].mxu0
        %v1124 = vadd.f32 0.0, %v1123
        %v1125 = vpop.f32.mrb[0].mxu0
        %1126 = vdwg.mxu0
        %v1127 = vlaneseq
        %v1128 = vshrl.u32 %v1127, 7
        %v1129 = vsub.s32 0, %v1128
        %v1130 = vrot.slane %v893, %v1129
        %v1131 = vlaneseq
        %v1132 = vshrl.u32 %v1131, 7
        %v1133 = vsub.s32 0, %v1132
        %v1134 = vrot.slane %v970, %v1133
        %v1135 = vlaneseq
        %v1136 = vshrl.u32 %v1135, 7
        %v1137 = vsub.s32 0, %v1136
        %v1138 = vrot.slane %v1047, %v1137
        %v1139 = vlaneseq
        %v1140 = vshrl.u32 %v1139, 7
        %v1141 = vsub.s32 0, %v1140
        %v1142 = vrot.slane %v1124, %v1141
        %v1143 = vadd.f32 %v793, %v1130
        %v1144 = vadd.f32 %v796, %v1130
        %v1145 = vadd.f32 %v799, %v1134
        %v1146 = vadd.f32 %v802, %v1134
        %v1147 = vadd.f32 %v805, %v1138
        %v1148 = vadd.f32 %v808, %v1138
        %v1149 = vadd.f32 %v811, %v1142
        %v1150 = vadd.f32 %v814, %v1142
        %v1151 = vmul.f32 %v1143, 0.1
        %v1152 = vmul.f32 %v1144, 0.1
        %v1153 = vmul.f32 %v1145, 0.1
        %v1154 = vmul.f32 %v1146, 0.1
        %v1155 = vmul.f32 %v1147, 0.1
        %v1156 = vmul.f32 %v1148, 0.1
        %v1157 = vmul.f32 %v1149, 0.1
        %v1158 = vmul.f32 %v1150, 0.1
        %v1159 = vmax.f32 %v1143, %v1151
        %v1160 = vmax.f32 %v1144, %v1152
        %v1161 = vmax.f32 %v1145, %v1153
        %v1162 = vmax.f32 %v1146, %v1154
        %v1163 = vmax.f32 %v1147, %v1155
        %v1164 = vmax.f32 %v1148, %v1156
        %v1165 = vmax.f32 %v1149, %v1157
        %v1166 = vmax.f32 %v1150, %v1158
        %v1167 = vmul.f32 %v1159, %v654
        %v1168 = vmul.f32 %v1160, %v655
        %v1169 = vmul.f32 %v1161, %v654
        %v1170 = vmul.f32 %v1162, %v655
        %v1171 = vmul.f32 %v1163, %v654
        %v1172 = vmul.f32 %v1164, %v655
        %v1173 = vmul.f32 %v1165, %v654
        %v1174 = vmul.f32 %v1166, %v655
        %v1175 = vadd.f32 %v1167, %v657
        %v1176 = vadd.f32 %v1168, %v658
        %v1177 = vadd.f32 %v1169, %v657
        %v1178 = vadd.f32 %v1170, %v658
        %v1179 = vadd.f32 %v1171, %v657
        %v1180 = vadd.f32 %v1172, %v658
        %v1181 = vadd.f32 %v1173, %v657
        %v1182 = vadd.f32 %v1174, %v658
        %vm1183 = vcmask 130048
        %v1184 = vsel %vm1183, %v1175, -inf
        %1185 = vmax.xlane.f32.xlu0 %v1184
        %v1186 = vpop.xlane.xlu0 %1185
        %v1187 = vsel %vm1183, %v1176, -inf
        %1188 = vmax.xlane.f32.xlu0 %v1187
        %v1189 = vpop.xlane.xlu0 %1188
        %v1190 = vsel %vm1183, %v1177, -inf
        %1191 = vmax.xlane.f32.xlu0 %v1190
        %v1192 = vpop.xlane.xlu0 %1191
        %v1193 = vsel %vm1183, %v1178, -inf
        %1194 = vmax.xlane.f32.xlu0 %v1193
        %v1195 = vpop.xlane.xlu0 %1194
        %v1196 = vsel %vm1183, %v1179, -inf
        %1197 = vmax.xlane.f32.xlu0 %v1196
        %v1198 = vpop.xlane.xlu0 %1197
        %v1199 = vsel %vm1183, %v1180, -inf
        %1200 = vmax.xlane.f32.xlu0 %v1199
        %v1201 = vpop.xlane.xlu0 %1200
        %v1202 = vsel %vm1183, %v1181, -inf
        %1203 = vmax.xlane.f32.xlu0 %v1202
        %v1204 = vpop.xlane.xlu0 %1203
        %v1205 = vsel %vm1183, %v1182, -inf
        %1206 = vmax.xlane.f32.xlu0 %v1205
        %v1207 = vpop.xlane.xlu0 %1206
        %v1208 = vsub.f32 %v1175, %v1186
        %v1209 = vsub.f32 %v1176, %v1189
        %v1210 = vsub.f32 %v1177, %v1192
        %v1211 = vsub.f32 %v1178, %v1195
        %v1212 = vsub.f32 %v1179, %v1198
        %v1213 = vsub.f32 %v1180, %v1201
        %v1214 = vsub.f32 %v1181, %v1204
        %v1215 = vsub.f32 %v1182, %v1207
        %v1216 = vmul.f32 %v1208, 1.442695
        %v1217 = vpow.pop %v1216
        %v1218 = vmul.f32 %v1209, 1.442695
        %v1219 = vpow.pop %v1218
        %v1220 = vmul.f32 %v1210, 1.442695
        %v1221 = vpow.pop %v1220
        %v1222 = vmul.f32 %v1211, 1.442695
        %v1223 = vpow.pop %v1222
        %v1224 = vmul.f32 %v1212, 1.442695
        %v1225 = vpow.pop %v1224
        %v1226 = vmul.f32 %v1213, 1.442695
        %v1227 = vpow.pop %v1226
        %v1228 = vmul.f32 %v1214, 1.442695
        %v1229 = vpow.pop %v1228
        %v1230 = vmul.f32 %v1215, 1.442695
        %v1231 = vpow.pop %v1230
        %v1232 = vsel %vm1183, %v1217, 0.0
        %1233 = vadd.xlane.f32.xlu0 %v1232
        %v1234 = vpop.xlane.xlu0 %1233
        %v1235 = vsel %vm1183, %v1219, 0.0
        %1236 = vadd.xlane.f32.xlu0 %v1235
        %v1237 = vpop.xlane.xlu0 %1236
        %v1238 = vsel %vm1183, %v1221, 0.0
        %1239 = vadd.xlane.f32.xlu0 %v1238
        %v1240 = vpop.xlane.xlu0 %1239
        %v1241 = vsel %vm1183, %v1223, 0.0
        %1242 = vadd.xlane.f32.xlu0 %v1241
        %v1243 = vpop.xlane.xlu0 %1242
        %v1244 = vsel %vm1183, %v1225, 0.0
        %1245 = vadd.xlane.f32.xlu0 %v1244
        %v1246 = vpop.xlane.xlu0 %1245
        %v1247 = vsel %vm1183, %v1227, 0.0
        %1248 = vadd.xlane.f32.xlu0 %v1247
        %v1249 = vpop.xlane.xlu0 %1248
        %v1250 = vsel %vm1183, %v1229, 0.0
        %1251 = vadd.xlane.f32.xlu0 %v1250
        %v1252 = vpop.xlane.xlu0 %1251
        %v1253 = vsel %vm1183, %v1231, 0.0
        %1254 = vadd.xlane.f32.xlu0 %v1253
        %v1255 = vpop.xlane.xlu0 %1254
        %v1256 = vrcp.pop %v1234
        %v1257 = vrcp.pop %v1237
        %v1258 = vrcp.pop %v1240
        %v1259 = vrcp.pop %v1243
        %v1260 = vrcp.pop %v1246
        %v1261 = vrcp.pop %v1249
        %v1262 = vrcp.pop %v1252
        %v1263 = vrcp.pop %v1255
        %v1264 = vmul.f32 %v1217, %v1256
        %v1265 = vmul.f32 %v1219, %v1257
        %v1266 = vmul.f32 %v1221, %v1258
        %v1267 = vmul.f32 %v1223, %v1259
        %v1268 = vmul.f32 %v1225, %v1260
        %v1269 = vmul.f32 %v1227, %v1261
        %v1270 = vmul.f32 %v1229, %v1262
        %v1271 = vmul.f32 %v1231, %v1263
        %v1272 = vpack.c.bf16 %v1265, %v1264
        %v1273 = vpack.c.bf16 %v1267, %v1266
        %v1274 = vpack.c.bf16 %v1269, %v1268
        %v1275 = vpack.c.bf16 %v1271, %v1270
        %v1277 = vsel %vm1183, %v1272, 0
        %1279 = vmatprep.subr.bf16.mxu0 0
        %1280 = vmatpush1.bf16.msra.mxu0 %v750
        %1281 = vmatprep.subr.bf16.mxu0 0
        %1282 = vmatpush1.bf16.msra.mxu0 0
        %1283 = vmatprep.subr.bf16.mxu0 0
        %1284 = vmatpush1.bf16.msra.mxu0 0
        %1285 = vmatprep.subr.bf16.mxu0 0
        %1286 = vmatpush1.bf16.msra.mxu0 0
        %1287 = vmatprep.subr.bf16.mxu0 0
        %1288 = vmatpush1.bf16.msra.mxu0 0
        %1289 = vmatprep.subr.bf16.mxu0 0
        %1290 = vmatpush1.bf16.msra.mxu0 0
        %1291 = vmatprep.subr.bf16.mxu0 0
        %1292 = vmatpush1.bf16.msra.mxu0 0
        %1293 = vmatprep.subr.bf16.mxu0 0
        %1294 = vmatpush1.bf16.msra.mxu0 0
        %1295 = vmatprep.subr.bf16.mxu0 0
        %1296 = vmatpush1.bf16.msra.mxu0 0
        %1297 = vmatprep.subr.bf16.mxu0 0
        %1298 = vmatpush1.bf16.msra.mxu0 0
        %1299 = vmatprep.subr.bf16.mxu0 0
        %1300 = vmatpush1.bf16.msra.mxu0 0
        %1301 = vmatprep.subr.bf16.mxu0 0
        %1302 = vmatpush1.bf16.msra.mxu0 0
        %1303 = vmatprep.subr.bf16.mxu0 0
        %1304 = vmatpush1.bf16.msra.mxu0 0
        %1305 = vmatprep.subr.bf16.mxu0 0
        %1306 = vmatpush1.bf16.msra.mxu0 0
        %1307 = vmatprep.subr.bf16.mxu0 0
        %1308 = vmatpush1.bf16.msra.mxu0 0
        %1309 = vmatprep.subr.bf16.mxu0 0
        %1310 = vmatpush1.bf16.msra.mxu0 0
        %1311 = vmatprep.mubr.bf16.mxu0 0
        %1312 = vmatmul.mubr.bf16.gmra.mrb[0].mxu0 %v1277
        %v1313 = vpop.f32.mrb[0].mxu0
        %v1314 = vadd.f32 0.0, %v1313
        %v1315 = vpop.f32.mrb[0].mxu0
        %v1316 = vpop.f32.mrb[0].mxu0
        %v1317 = vadd.f32 0.0, %v1316
        %v1318 = vpop.f32.mrb[0].mxu0
        %1319 = vdwg.mxu0
        %v1321 = vsel %vm1183, %v1273, 0
        %1323 = vmatprep.subr.bf16.mxu0 0
        %1324 = vmatpush1.bf16.msra.mxu0 %v751
        %1325 = vmatprep.subr.bf16.mxu0 0
        %1326 = vmatpush1.bf16.msra.mxu0 0
        %1327 = vmatprep.subr.bf16.mxu0 0
        %1328 = vmatpush1.bf16.msra.mxu0 0
        %1329 = vmatprep.subr.bf16.mxu0 0
        %1330 = vmatpush1.bf16.msra.mxu0 0
        %1331 = vmatprep.subr.bf16.mxu0 0
        %1332 = vmatpush1.bf16.msra.mxu0 0
        %1333 = vmatprep.subr.bf16.mxu0 0
        %1334 = vmatpush1.bf16.msra.mxu0 0
        %1335 = vmatprep.subr.bf16.mxu0 0
        %1336 = vmatpush1.bf16.msra.mxu0 0
        %1337 = vmatprep.subr.bf16.mxu0 0
        %1338 = vmatpush1.bf16.msra.mxu0 0
        %1339 = vmatprep.subr.bf16.mxu0 0
        %1340 = vmatpush1.bf16.msra.mxu0 0
        %1341 = vmatprep.subr.bf16.mxu0 0
        %1342 = vmatpush1.bf16.msra.mxu0 0
        %1343 = vmatprep.subr.bf16.mxu0 0
        %1344 = vmatpush1.bf16.msra.mxu0 0
        %1345 = vmatprep.subr.bf16.mxu0 0
        %1346 = vmatpush1.bf16.msra.mxu0 0
        %1347 = vmatprep.subr.bf16.mxu0 0
        %1348 = vmatpush1.bf16.msra.mxu0 0
        %1349 = vmatprep.subr.bf16.mxu0 0
        %1350 = vmatpush1.bf16.msra.mxu0 0
        %1351 = vmatprep.subr.bf16.mxu0 0
        %1352 = vmatpush1.bf16.msra.mxu0 0
        %1353 = vmatprep.subr.bf16.mxu0 0
        %1354 = vmatpush1.bf16.msra.mxu0 0
        %1355 = vmatprep.mubr.bf16.mxu0 0
        %1356 = vmatmul.mubr.bf16.gmra.mrb[0].mxu0 %v1321
        %v1357 = vpop.f32.mrb[0].mxu0
        %v1358 = vadd.f32 0.0, %v1357
        %v1359 = vpop.f32.mrb[0].mxu0
        %v1360 = vpop.f32.mrb[0].mxu0
        %v1361 = vadd.f32 0.0, %v1360
        %v1362 = vpop.f32.mrb[0].mxu0
        %1363 = vdwg.mxu0
        %v1365 = vsel %vm1183, %v1274, 0
        %1367 = vmatprep.subr.bf16.mxu0 0
        %1368 = vmatpush1.bf16.msra.mxu0 %v752
        %1369 = vmatprep.subr.bf16.mxu0 0
        %1370 = vmatpush1.bf16.msra.mxu0 0
        %1371 = vmatprep.subr.bf16.mxu0 0
        %1372 = vmatpush1.bf16.msra.mxu0 0
        %1373 = vmatprep.subr.bf16.mxu0 0
        %1374 = vmatpush1.bf16.msra.mxu0 0
        %1375 = vmatprep.subr.bf16.mxu0 0
        %1376 = vmatpush1.bf16.msra.mxu0 0
        %1377 = vmatprep.subr.bf16.mxu0 0
        %1378 = vmatpush1.bf16.msra.mxu0 0
        %1379 = vmatprep.subr.bf16.mxu0 0
        %1380 = vmatpush1.bf16.msra.mxu0 0
        %1381 = vmatprep.subr.bf16.mxu0 0
        %1382 = vmatpush1.bf16.msra.mxu0 0
        %1383 = vmatprep.subr.bf16.mxu0 0
        %1384 = vmatpush1.bf16.msra.mxu0 0
        %1385 = vmatprep.subr.bf16.mxu0 0
        %1386 = vmatpush1.bf16.msra.mxu0 0
        %1387 = vmatprep.subr.bf16.mxu0 0
        %1388 = vmatpush1.bf16.msra.mxu0 0
        %1389 = vmatprep.subr.bf16.mxu0 0
        %1390 = vmatpush1.bf16.msra.mxu0 0
        %1391 = vmatprep.subr.bf16.mxu0 0
        %1392 = vmatpush1.bf16.msra.mxu0 0
        %1393 = vmatprep.subr.bf16.mxu0 0
        %1394 = vmatpush1.bf16.msra.mxu0 0
        %1395 = vmatprep.subr.bf16.mxu0 0
        %1396 = vmatpush1.bf16.msra.mxu0 0
        %1397 = vmatprep.subr.bf16.mxu0 0
        %1398 = vmatpush1.bf16.msra.mxu0 0
        %1399 = vmatprep.mubr.bf16.mxu0 0
        %1400 = vmatmul.mubr.bf16.gmra.mrb[0].mxu0 %v1365
        %v1401 = vpop.f32.mrb[0].mxu0
        %v1402 = vadd.f32 0.0, %v1401
        %v1403 = vpop.f32.mrb[0].mxu0
        %v1404 = vpop.f32.mrb[0].mxu0
        %v1405 = vadd.f32 0.0, %v1404
        %v1406 = vpop.f32.mrb[0].mxu0
        %1407 = vdwg.mxu0
        %v1409 = vsel %vm1183, %v1275, 0
        %1411 = vmatprep.subr.bf16.mxu0 0
        %1412 = vmatpush1.bf16.msra.mxu0 %v753
        %1413 = vmatprep.subr.bf16.mxu0 0
        %1414 = vmatpush1.bf16.msra.mxu0 0
        %1415 = vmatprep.subr.bf16.mxu0 0
        %1416 = vmatpush1.bf16.msra.mxu0 0
        %1417 = vmatprep.subr.bf16.mxu0 0
        %1418 = vmatpush1.bf16.msra.mxu0 0
        %1419 = vmatprep.subr.bf16.mxu0 0
        %1420 = vmatpush1.bf16.msra.mxu0 0
        %1421 = vmatprep.subr.bf16.mxu0 0
        %1422 = vmatpush1.bf16.msra.mxu0 0
        %1423 = vmatprep.subr.bf16.mxu0 0
        %1424 = vmatpush1.bf16.msra.mxu0 0
        %1425 = vmatprep.subr.bf16.mxu0 0
        %1426 = vmatpush1.bf16.msra.mxu0 0
        %1427 = vmatprep.subr.bf16.mxu0 0
        %1428 = vmatpush1.bf16.msra.mxu0 0
        %1429 = vmatprep.subr.bf16.mxu0 0
        %1430 = vmatpush1.bf16.msra.mxu0 0
        %1431 = vmatprep.subr.bf16.mxu0 0
        %1432 = vmatpush1.bf16.msra.mxu0 0
        %1433 = vmatprep.subr.bf16.mxu0 0
        %1434 = vmatpush1.bf16.msra.mxu0 0
        %1435 = vmatprep.subr.bf16.mxu0 0
        %1436 = vmatpush1.bf16.msra.mxu0 0
        %1437 = vmatprep.subr.bf16.mxu0 0
        %1438 = vmatpush1.bf16.msra.mxu0 0
        %1439 = vmatprep.subr.bf16.mxu0 0
        %1440 = vmatpush1.bf16.msra.mxu0 0
        %1441 = vmatprep.subr.bf16.mxu0 0
        %1442 = vmatpush1.bf16.msra.mxu0 0
        %1443 = vmatprep.mubr.bf16.mxu0 0
        %1444 = vmatmul.mubr.bf16.gmra.mrb[0].mxu0 %v1409
        %v1445 = vpop.f32.mrb[0].mxu0
        %v1446 = vadd.f32 0.0, %v1445
        %v1447 = vpop.f32.mrb[0].mxu0
        %v1448 = vpop.f32.mrb[0].mxu0
        %v1449 = vadd.f32 0.0, %v1448
        %v1450 = vpop.f32.mrb[0].mxu0
        %1451 = vdwg.mxu0
        %v1452 = vpack.c.bf16 %v1317, %v1314
        %v1453 = vpack.c.bf16 %v1361, %v1358
        %v1454 = vpack.c.bf16 %v1405, %v1402
        %v1455 = vpack.c.bf16 %v1449, %v1446
        %v1456 = vld [vmem:[%s635] sm:$0xf]
        %v1457 = vld [vmem:[%s635 + $0x4] sm:$0xf]
        %v1458 = vld [vmem:[%s635 + $0x8] sm:$0xf]
        %v1459 = vld [vmem:[%s635 + $0xc] sm:$0xf]
        %v1461 = vsel %vm790, %v1452, 0
        %vm1463 = vcmask 1043456
        %v1465 = vsel %vm1463, %v1456, 0
        %1467 = vmatprep.subr.bf16.mxu0 0
        %1468 = vmatpush1.bf16.msra.mxu0 %v1465
        %1469 = vmatprep.subr.bf16.mxu0 0
        %1470 = vmatpush1.bf16.msra.mxu0 0
        %1471 = vmatprep.subr.bf16.mxu0 0
        %1472 = vmatpush1.bf16.msra.mxu0 0
        %1473 = vmatprep.subr.bf16.mxu0 0
        %1474 = vmatpush1.bf16.msra.mxu0 0
        %1475 = vmatprep.subr.bf16.mxu0 0
        %1476 = vmatpush1.bf16.msra.mxu0 0
        %1477 = vmatprep.subr.bf16.mxu0 0
        %1478 = vmatpush1.bf16.msra.mxu0 0
        %1479 = vmatprep.subr.bf16.mxu0 0
        %1480 = vmatpush1.bf16.msra.mxu0 0
        %1481 = vmatprep.subr.bf16.mxu0 0
        %1482 = vmatpush1.bf16.msra.mxu0 0
        %1483 = vmatprep.subr.bf16.mxu0 0
        %1484 = vmatpush1.bf16.msra.mxu0 0
        %1485 = vmatprep.subr.bf16.mxu0 0
        %1486 = vmatpush1.bf16.msra.mxu0 0
        %1487 = vmatprep.subr.bf16.mxu0 0
        %1488 = vmatpush1.bf16.msra.mxu0 0
        %1489 = vmatprep.subr.bf16.mxu0 0
        %1490 = vmatpush1.bf16.msra.mxu0 0
        %1491 = vmatprep.subr.bf16.mxu0 0
        %1492 = vmatpush1.bf16.msra.mxu0 0
        %1493 = vmatprep.subr.bf16.mxu0 0
        %1494 = vmatpush1.bf16.msra.mxu0 0
        %1495 = vmatprep.subr.bf16.mxu0 0
        %1496 = vmatpush1.bf16.msra.mxu0 0
        %1497 = vmatprep.subr.bf16.mxu0 0
        %1498 = vmatpush1.bf16.msra.mxu0 0
        %1499 = vmatprep.mubr.bf16.mxu0 0
        %1500 = vmatmul.mubr.bf16.gmra.mrb[0].mxu0 %v1461
        %v1501 = vpop.f32.mrb[0].mxu0
        %v1502 = vadd.f32 0.0, %v1501
        %v1503 = vpop.f32.mrb[0].mxu0
        %v1504 = vpop.f32.mrb[0].mxu0
        %v1505 = vadd.f32 0.0, %v1504
        %v1506 = vpop.f32.mrb[0].mxu0
        %1507 = vdwg.mxu0
        %v1509 = vsel %vm790, %v1453, 0
        %v1512 = vsel %vm1463, %v1457, 0
        %1514 = vmatprep.subr.bf16.mxu0 0
        %1515 = vmatpush1.bf16.msra.mxu0 %v1512
        %1516 = vmatprep.subr.bf16.mxu0 0
        %1517 = vmatpush1.bf16.msra.mxu0 0
        %1518 = vmatprep.subr.bf16.mxu0 0
        %1519 = vmatpush1.bf16.msra.mxu0 0
        %1520 = vmatprep.subr.bf16.mxu0 0
        %1521 = vmatpush1.bf16.msra.mxu0 0
        %1522 = vmatprep.subr.bf16.mxu0 0
        %1523 = vmatpush1.bf16.msra.mxu0 0
        %1524 = vmatprep.subr.bf16.mxu0 0
        %1525 = vmatpush1.bf16.msra.mxu0 0
        %1526 = vmatprep.subr.bf16.mxu0 0
        %1527 = vmatpush1.bf16.msra.mxu0 0
        %1528 = vmatprep.subr.bf16.mxu0 0
        %1529 = vmatpush1.bf16.msra.mxu0 0
        %1530 = vmatprep.subr.bf16.mxu0 0
        %1531 = vmatpush1.bf16.msra.mxu0 0
        %1532 = vmatprep.subr.bf16.mxu0 0
        %1533 = vmatpush1.bf16.msra.mxu0 0
        %1534 = vmatprep.subr.bf16.mxu0 0
        %1535 = vmatpush1.bf16.msra.mxu0 0
        %1536 = vmatprep.subr.bf16.mxu0 0
        %1537 = vmatpush1.bf16.msra.mxu0 0
        %1538 = vmatprep.subr.bf16.mxu0 0
        %1539 = vmatpush1.bf16.msra.mxu0 0
        %1540 = vmatprep.subr.bf16.mxu0 0
        %1541 = vmatpush1.bf16.msra.mxu0 0
        %1542 = vmatprep.subr.bf16.mxu0 0
        %1543 = vmatpush1.bf16.msra.mxu0 0
        %1544 = vmatprep.subr.bf16.mxu0 0
        %1545 = vmatpush1.bf16.msra.mxu0 0
        %1546 = vmatprep.mubr.bf16.mxu0 0
        %1547 = vmatmul.mubr.bf16.gmra.mrb[0].mxu0 %v1509
        %v1548 = vpop.f32.mrb[0].mxu0
        %v1549 = vadd.f32 0.0, %v1548
        %v1550 = vpop.f32.mrb[0].mxu0
        %v1551 = vpop.f32.mrb[0].mxu0
        %v1552 = vadd.f32 0.0, %v1551
        %v1553 = vpop.f32.mrb[0].mxu0
        %1554 = vdwg.mxu0
        %v1556 = vsel %vm790, %v1454, 0
        %v1559 = vsel %vm1463, %v1458, 0
        %1561 = vmatprep.subr.bf16.mxu0 0
        %1562 = vmatpush1.bf16.msra.mxu0 %v1559
        %1563 = vmatprep.subr.bf16.mxu0 0
        %1564 = vmatpush1.bf16.msra.mxu0 0
        %1565 = vmatprep.subr.bf16.mxu0 0
        %1566 = vmatpush1.bf16.msra.mxu0 0
        %1567 = vmatprep.subr.bf16.mxu0 0
        %1568 = vmatpush1.bf16.msra.mxu0 0
        %1569 = vmatprep.subr.bf16.mxu0 0
        %1570 = vmatpush1.bf16.msra.mxu0 0
        %1571 = vmatprep.subr.bf16.mxu0 0
        %1572 = vmatpush1.bf16.msra.mxu0 0
        %1573 = vmatprep.subr.bf16.mxu0 0
        %1574 = vmatpush1.bf16.msra.mxu0 0
        %1575 = vmatprep.subr.bf16.mxu0 0
        %1576 = vmatpush1.bf16.msra.mxu0 0
        %1577 = vmatprep.subr.bf16.mxu0 0
        %1578 = vmatpush1.bf16.msra.mxu0 0
        %1579 = vmatprep.subr.bf16.mxu0 0
        %1580 = vmatpush1.bf16.msra.mxu0 0
        %1581 = vmatprep.subr.bf16.mxu0 0
        %1582 = vmatpush1.bf16.msra.mxu0 0
        %1583 = vmatprep.subr.bf16.mxu0 0
        %1584 = vmatpush1.bf16.msra.mxu0 0
        %1585 = vmatprep.subr.bf16.mxu0 0
        %1586 = vmatpush1.bf16.msra.mxu0 0
        %1587 = vmatprep.subr.bf16.mxu0 0
        %1588 = vmatpush1.bf16.msra.mxu0 0
        %1589 = vmatprep.subr.bf16.mxu0 0
        %1590 = vmatpush1.bf16.msra.mxu0 0
        %1591 = vmatprep.subr.bf16.mxu0 0
        %1592 = vmatpush1.bf16.msra.mxu0 0
        %1593 = vmatprep.mubr.bf16.mxu0 0
        %1594 = vmatmul.mubr.bf16.gmra.mrb[0].mxu0 %v1556
        %v1595 = vpop.f32.mrb[0].mxu0
        %v1596 = vadd.f32 0.0, %v1595
        %v1597 = vpop.f32.mrb[0].mxu0
        %v1598 = vpop.f32.mrb[0].mxu0
        %v1599 = vadd.f32 0.0, %v1598
        %v1600 = vpop.f32.mrb[0].mxu0
        %1601 = vdwg.mxu0
        %v1603 = vsel %vm790, %v1455, 0
        %v1606 = vsel %vm1463, %v1459, 0
        %1608 = vmatprep.subr.bf16.mxu0 0
        %1609 = vmatpush1.bf16.msra.mxu0 %v1606
        %1610 = vmatprep.subr.bf16.mxu0 0
        %1611 = vmatpush1.bf16.msra.mxu0 0
        %1612 = vmatprep.subr.bf16.mxu0 0
        %1613 = vmatpush1.bf16.msra.mxu0 0
        %1614 = vmatprep.subr.bf16.mxu0 0
        %1615 = vmatpush1.bf16.msra.mxu0 0
        %1616 = vmatprep.subr.bf16.mxu0 0
        %1617 = vmatpush1.bf16.msra.mxu0 0
        %1618 = vmatprep.subr.bf16.mxu0 0
        %1619 = vmatpush1.bf16.msra.mxu0 0
        %1620 = vmatprep.subr.bf16.mxu0 0
        %1621 = vmatpush1.bf16.msra.mxu0 0
        %1622 = vmatprep.subr.bf16.mxu0 0
        %1623 = vmatpush1.bf16.msra.mxu0 0
        %1624 = vmatprep.subr.bf16.mxu0 0
        %1625 = vmatpush1.bf16.msra.mxu0 0
        %1626 = vmatprep.subr.bf16.mxu0 0
        %1627 = vmatpush1.bf16.msra.mxu0 0
        %1628 = vmatprep.subr.bf16.mxu0 0
        %1629 = vmatpush1.bf16.msra.mxu0 0
        %1630 = vmatprep.subr.bf16.mxu0 0
        %1631 = vmatpush1.bf16.msra.mxu0 0
        %1632 = vmatprep.subr.bf16.mxu0 0
        %1633 = vmatpush1.bf16.msra.mxu0 0
        %1634 = vmatprep.subr.bf16.mxu0 0
        %1635 = vmatpush1.bf16.msra.mxu0 0
        %1636 = vmatprep.subr.bf16.mxu0 0
        %1637 = vmatpush1.bf16.msra.mxu0 0
        %1638 = vmatprep.subr.bf16.mxu0 0
        %1639 = vmatpush1.bf16.msra.mxu0 0
        %1640 = vmatprep.mubr.bf16.mxu0 0
        %1641 = vmatmul.mubr.bf16.gmra.mrb[0].mxu0 %v1603
        %v1642 = vpop.f32.mrb[0].mxu0
        %v1643 = vadd.f32 0.0, %v1642
        %v1644 = vpop.f32.mrb[0].mxu0
        %v1645 = vpop.f32.mrb[0].mxu0
        %v1646 = vadd.f32 0.0, %v1645
        %v1647 = vpop.f32.mrb[0].mxu0
        %1648 = vdwg.mxu0
        %v1649 = vsel %vm685, %v1502, 0.0
        %v1650 = vsel %vm685, %v1549, 0.0
        %v1651 = vadd.f32 %v1649, %v1650
        %v1652 = vsel %vm685, %v1596, 0.0
        %v1653 = vadd.f32 %v1651, %v1652
        %v1654 = vsel %vm685, %v1643, 0.0
        %v1655 = vadd.f32 %v1653, %v1654
        %v1656 = vsel %vm685, %v1505, 0.0
        %v1657 = vsel %vm685, %v1552, 0.0
        %v1658 = vadd.f32 %v1656, %v1657
        %v1659 = vsel %vm685, %v1599, 0.0
        %v1660 = vadd.f32 %v1658, %v1659
        %v1661 = vsel %vm685, %v1646, 0.0
        %v1662 = vadd.f32 %v1660, %v1661
        %v1663 = vld [vmem:[%s638] sm:$0x1]
        %v1665 = vlaneseq
        %v1666 = vshrl.u32 %v1665, 7
        %v1667 = vsub.s32 0, %v1666
        %v1668 = vrot.slane %v1663, %v1667
        %v1670 = vadd.f32 %v1655, %v1668
        %v1671 = vadd.f32 %v1662, %v1668
        %v1672 = vld [vmem:[%s641] sm:$0x1]
        %vm1673 = vcmp.gt.f32.partialorder %v1670, 0.0
        %vm1674 = vcmp.gt.f32.partialorder %v1671, 0.0
        %v1676 = vlaneseq
        %v1677 = vshrl.u32 %v1676, 7
        %v1678 = vsub.s32 0, %v1677
        %v1679 = vrot.slane %v1672, %v1678
        %1680 = vset.pattern.permute.xlu0 0
        %1681 = vperm.xlu0 %1680, %v1679
        %v1682 = vpop.permute.xlu0 %1681
        %v1684 = vmul.f32 %v1682, %v1670
        %v1685 = vmul.f32 %v1682, %v1671
        %v1686 = vsel %vm1673, %v1670, %v1684
        %v1687 = vsel %vm1674, %v1671, %v1685
        %v1688 = vld [vmem:[%s627] sm:$0xff]
        %v1689 = vld [vmem:[%s627 + $0x8] sm:$0xff]
        %v1690 = vpack.c.bf16 %v1687, %v1686
        %v1691 = vld [vmem:[%s555] sm:$0xf]
        %v1692 = vld [vmem:[%s555 + $0x4] sm:$0xf]
        %v1693 = vld [vmem:[%s555 + $0x8] sm:$0xf]
        %v1694 = vld [vmem:[%s555 + $0xc] sm:$0xf]
        %v1699 = vunpack.c.l.b16 %v1691
        %v1700 = vunpack.c.l.b16 %v1692
        %v1701 = vunpack.c.l.b16 %v1693
        %v1702 = vunpack.c.l.b16 %v1694
        %v1703 = vpack.c.b16 %v1700, %v1699
        %v1704 = vpack.c.b16 %v1702, %v1701
        %v1708 = vsel %vm685, %v1690, 0
        %1710 = vmatprep.subr.bf16.mxu0 0
        %1711 = vmatpush1.bf16.msra.mxu0 %v1703
        %1712 = vmatprep.subr.bf16.mxu0 0
        %1713 = vmatpush1.bf16.msra.mxu0 %v1704
        %1714 = vmatprep.subr.bf16.mxu0 0
        %1715 = vmatpush1.bf16.msra.mxu0 0
        %1716 = vmatprep.subr.bf16.mxu0 0
        %1717 = vmatpush1.bf16.msra.mxu0 0
        %1718 = vmatprep.subr.bf16.mxu0 0
        %1719 = vmatpush1.bf16.msra.mxu0 0
        %1720 = vmatprep.subr.bf16.mxu0 0
        %1721 = vmatpush1.bf16.msra.mxu0 0
        %1722 = vmatprep.subr.bf16.mxu0 0
        %1723 = vmatpush1.bf16.msra.mxu0 0
        %1724 = vmatprep.subr.bf16.mxu0 0
        %1725 = vmatpush1.bf16.msra.mxu0 0
        %1726 = vmatprep.subr.bf16.mxu0 0
        %1727 = vmatpush1.bf16.msra.mxu0 0
        %1728 = vmatprep.subr.bf16.mxu0 0
        %1729 = vmatpush1.bf16.msra.mxu0 0
        %1730 = vmatprep.subr.bf16.mxu0 0
        %1731 = vmatpush1.bf16.msra.mxu0 0
        %1732 = vmatprep.subr.bf16.mxu0 0
        %1733 = vmatpush1.bf16.msra.mxu0 0
        %1734 = vmatprep.subr.bf16.mxu0 0
        %1735 = vmatpush1.bf16.msra.mxu0 0
        %1736 = vmatprep.subr.bf16.mxu0 0
        %1737 = vmatpush1.bf16.msra.mxu0 0
        %1738 = vmatprep.subr.bf16.mxu0 0
        %1739 = vmatpush1.bf16.msra.mxu0 0
        %1740 = vmatprep.subr.bf16.mxu0 0
        %1741 = vmatpush1.bf16.msra.mxu0 0
        %1742 = vmatprep.mubr.bf16.mxu0 0
        %1743 = vmatmul.mubr.bf16.gmra.mrb[0].mxu0 %v1708
        %v1744 = vpop.f32.mrb[0].mxu0
        %v1745 = vadd.f32 0.0, %v1744
        %v1746 = vpop.f32.mrb[0].mxu0
        %v1747 = vpop.f32.mrb[0].mxu0
        %v1748 = vadd.f32 0.0, %v1747
        %v1749 = vpop.f32.mrb[0].mxu0
        %1750 = vdwg.mxu0
        %v1751 = vadd.f32 %v1688, %v1745
        %v1752 = vadd.f32 %v1689, %v1748
        %1753 = vst.msk [vmem:[%s627] sm:$0xff] %vm685, %v1751
        %1754 = vst.msk [vmem:[%s627 + $0x8] sm:$0xff] %vm685, %v1752
        %1755 = vst.msk [vmem:[#allocation2] sm:$0xff] %vm685, %v1686
        %1756 = vst.msk [vmem:[#allocation2 + $0x8] sm:$0xff] %vm685, %v1687
        %p1757 = scmp.eq.s32.totalorder %s34, 1
        // Predicated region
        $region93: #{gat_encoder_forward.1} parent=63 // pred_check
          %p1758 = pneg %p1757
        $region94: #{gat_encoder_forward.1} parent=63 // pred_check_branch
          %1760 = sbr.rel (%p1758) target = $region96
        $region95: #{gat_encoder_forward.1} parent=63 // pred_region
          %v1761 = vld [vmem:[%s627] sm:$0xff]
          %v1762 = vld [vmem:[%s627 + $0x8] sm:$0xff]
          %v1763 = vld [vmem:[%s9] sm:$0x1]
          %v1765 = vlaneseq
          %v1766 = vshrl.u32 %v1765, 7
          %v1767 = vsub.s32 0, %v1766
          %v1768 = vrot.slane %v1763, %v1767
          %v1770 = vadd.f32 %v1761, %v1768
          %v1771 = vadd.f32 %v1762, %v1768
          %1772 = vst.msk [vmem:[%s627] sm:$0xff] %vm685, %v1770
          %1773 = vst.msk [vmem:[%s627 + $0x8] sm:$0xff] %vm685, %v1771
        $region96: #{gat_encoder_forward.1} parent=63 // pred_fallthru
          _
        %s1774 = sand.u32 %s325, 1
        %s1775 = scalar_lea.sflag [#allocation5], %s1774
        %s1776 = sand.u32 %s325, 1
        %s1777 = smul.addr %s1776, 16
        %s1778 = scalar_lea.vmem [#allocation12], %s1777
        // Predicated region
        $region97: #{gat_encoder_forward.1} parent=63 // pred_check
          %p1779 = pneg %p335
        $region98: #{gat_encoder_forward.1} parent=63 // pred_check_branch
          %1781 = sbr.rel (%p1779) target = $region100
        $region99: #{gat_encoder_forward.1} parent=63 // pred_region
          %s1783 = ssub.s32 256, 256
          %1784 = vsyncadd %s1775, %s1783
          %s1785 = smul.addr %s33, 2
          %s1786 = smul.addr %s1785, 128
          %s1787 = scalar_lea.hbm %s11, %s1786
          %s1788 = sshll.u32 %s1778, 4
          %s1789 = int_to_ptr.vmem [resolvable:$true] %s1788
          %1794 = dma.vmem_to_hbm [thread:$0]  %s1789, 256, %s1787, %s1775, 128, 128, 8
        $region100: #{gat_encoder_forward.1} parent=63 // pred_fallthru
          _
      $region64: #{gat_encoder_forward.1} parent=5 // pred_fallthru
        _
      %p1795 = scmp.le.s32.totalorder 2, %s24
      // Predicated region
      $region101: #{gat_encoder_forward.1} parent=5 // pred_check
        %p1796 = pneg %p1795
      $region102: #{gat_encoder_forward.1} parent=5 // pred_check_branch
        %1798 = sbr.rel (%p1796) target = $region104
      $region103: #{gat_encoder_forward.1} parent=5 // pred_region
        %s1799 = ssub.s32 %s24, 2
        // Predicated region
        $region105: #{gat_encoder_forward.1} parent=103 // pred_check
          %p1800 = pneg %p341
        $region106: #{gat_encoder_forward.1} parent=103 // pred_check_branch
          %1802 = sbr.rel (%p1800) target = $region108
        $region107: #{gat_encoder_forward.1} parent=103 // pred_region
          %s1803 = sand.u32 %s326, 1
          %s1804 = scalar_lea.sflag [#allocation5], %s1803
          %s1805 = sand.u32 %s326, 1
          %s1806 = smul.addr %s1805, 16
          %s1807 = scalar_lea.vmem [#allocation12], %s1806
          %1808 = dma.done %s1804, 256
        $region108: #{gat_encoder_forward.1} parent=103 // pred_fallthru
          _
      $region104: #{gat_encoder_forward.1} parent=5 // pred_fallthru
        _
    $region6: #{gat_encoder_forward.1} parent=1 // loop_footer
      %s28 = sadd.s32 1, %s24
    $region7: #{gat_encoder_forward.1} parent=1 // loop_footer_branch
      %23 = sbr.rel target = $region3
    $region8: #{gat_encoder_forward.1} parent=1 // loop_exit
      _
    %1809 = vsyncpa [#allocation4], 1
    %s1810 = scalar_lea.sflag [#allocation4], 1
    %1811 = vsyncpa %s1810, 1
    %1812 = vsyncpa [#allocation7], 1
    %1813 = vsyncpa [#allocation5], 1
    %s1814 = scalar_lea.sflag [#allocation5], 1
    %1815 = vsyncpa %s1814, 1

</llo_original>
